<compile_context>
chip_gen: v6e
topology: v6e:2x2x1
jax: 0.10.0
libtpu: 0.0.40
codegen_flags: <defaults>
</compile_context>

<pallas_src>
import numpy as np
import jax
import jax.numpy as jnp
from jax.experimental import pallas as pl
from jax.experimental.pallas import tpu as pltpu

EPS = 1e-5
KH, KW = 3, 5
PH, PW = 1, 2


def hexagonal_block_kernel(x_ref, b1_ref, b2_ref, amask_ref, top_ref, bot_ref,
                           rowsel_ref, sel_ref, selt_ref,
                           g1_ref, be1_ref, g2_ref, be2_ref, o_ref):
    """Single-invocation kernel (whole demo problem resident in VMEM).

    x_ref     : (NH, WC)       lane-dense input (W and C folded onto lanes)
    b*_ref    : (3*WC, WC)     banded conv matrices, kh bands stacked along K
    amask_ref : (NH, WC)       activations mask broadcast over channels
    top_ref   : (NH, 1)        1 where a row above exists inside the same image
    bot_ref   : (NH, 1)        1 where a row below exists inside the same image
    rowsel_ref: (2, 1)         [[1],[0]] row selector for stacking BN stats
    sel_ref   : (WC, C)        0/1 matrix: lane (w*C+c) -> channel c
    selt_ref  : (C, WC)        transpose of sel (channel -> all of its lanes)
    g*/be*    : (1, C)         batchnorm gamma / beta
    o_ref     : (NH, WC)       lane-dense output
    """
    NH, WC = x_ref.shape
    C = g1_ref.shape[1]
    W = WC // C
    inv_m = 1.0 / float(NH * W)       # BN reduces over N*H*W elements per channel

    x_in = x_ref[...]
    amask = amask_ref[...]
    top_ok = top_ref[...]
    bot_ok = bot_ref[...]
    rowsel = rowsel_ref[...]
    sel = sel_ref[...]
    selt = selt_ref[...]

    def conv(x_flat, b_ref):
        # 3x5 hex-masked conv as ONE banded MXU matmul (K = 3*WC): the +/-1 row
        # shifts are XLU sublane rolls + image-edge masks (SAME padding along H),
        # lane-concatenated and contracted against the kh bands stacked along K,
        # so all accumulation stays inside the MXU.
        x_up = pltpu.roll(x_flat, shift=1, axis=0) * top_ok        # row r <- x[r-1]
        x_dn = pltpu.roll(x_flat, shift=NH - 1, axis=0) * bot_ok   # row r <- x[r+1]
        x_cat = jnp.concatenate([x_up, x_flat, x_dn], axis=1)      # (NH, 3*WC)
        return jnp.dot(x_cat, b_ref[...], preferred_element_type=jnp.float32)

    def batchnorm(y, g_ref, b_ref):
        # Training-mode BatchNorm2d, single-pass batch stats per channel.
        # The four M=1 dots are batched into two M=2 dots.
        y_sum = jnp.sum(y, axis=0, keepdims=True)            # (1, WC)
        y2_sum = jnp.sum(y * y, axis=0, keepdims=True)       # (1, WC)
        stats = rowsel * y_sum + (1.0 - rowsel) * y2_sum     # (2, WC): [sum(y); sum(y^2)]
        s = jnp.dot(stats, sel, preferred_element_type=jnp.float32)   # (2, C)
        mean = s[0:1, :] * inv_m
        ex2 = s[1:2, :] * inv_m
        # TODO(synk): single-pass variance is cancellation-prone at production scale;
        # switch to a shifted / two-pass form if tolerances tighten.
        var = jnp.maximum(ex2 - mean * mean, 0.0)
        scale = g_ref[...] * jax.lax.rsqrt(var + EPS)         # (1, C)
        shift = b_ref[...] - mean * scale                     # (1, C)
        ss = rowsel * scale + (1.0 - rowsel) * shift          # (2, C): [scale; shift]
        ss_wc = jnp.dot(ss, selt, preferred_element_type=jnp.float32)  # (2, WC)
        return y * ss_wc[0:1, :] + ss_wc[1:2, :]

    def swish(t):
        return t * jax.nn.sigmoid(t)

    # branch 1: swish(bn1(conv1(x))) * mask
    h1 = swish(batchnorm(conv(x_in, b1_ref), g1_ref, be1_ref)) * amask
    # branch 2: swish(bn2(conv2(h1)) + x) * mask
    h2 = swish(batchnorm(conv(h1, b2_ref), g2_ref, be2_ref) + x_in) * amask
    o_ref[...] = h2


def make_hexagonal_block_params(w1, w2, kernel_mask, activations_mask_hw,
                                g1, b1, g2, b2, batch):
    """Host-side, built ONCE (not per forward): banded stacked conv matrices,
    masks and BN selection matrices (direct index construction, no 6-D temp)."""
    w1 = np.asarray(w1, np.float32)
    w2 = np.asarray(w2, np.float32)
    kmask = np.asarray(kernel_mask, np.float32)
    am = np.asarray(activations_mask_hw, np.float32)
    C = w1.shape[0]
    H, W = am.shape
    N = batch
    WC = W * C
    NH = N * H

    def banded_stacked(wgt):
        # B[kh, wp*C + ci, w*C + co] = (wgt * kmask)[co, ci, kh, kw], kw = wp - w + PW.
        # Out-of-band entries stay zero -> SAME padding along W folded in; hexagon
        # zero taps are just zero blocks. The three kh bands are stacked along K so
        # the conv is one (NH, 3*WC) @ (3*WC, WC) dot.
        wm = wgt * kmask[None, None, :, :]                     # (Co, Ci, KH, KW)
        B = np.zeros((KH, WC, WC), np.float32)
        for kh in range(KH):
            for kw in range(KW):
                tap = wm[:, :, kh, kw].T                       # (Ci, Co)
                for w in range(W):
                    wp = w + kw - PW
                    if 0 <= wp < W:
                        B[kh, wp * C:(wp + 1) * C, w * C:(w + 1) * C] = tap
        return B.reshape(KH * WC, WC)

    amask = np.broadcast_to(am[None, :, :, None], (N, H, W, C)).reshape(NH, WC).copy()

    h_of_row = np.arange(NH) % H
    top_ok = (h_of_row > 0).astype(np.float32).reshape(NH, 1)       # row above exists
    bot_ok = (h_of_row < H - 1).astype(np.float32).reshape(NH, 1)   # row below exists

    sel = np.zeros((WC, C), np.float32)
    sel[np.arange(WC), np.arange(WC) % C] = 1.0

    rowsel = np.array([[1.0], [0.0]], np.float32)

    to_j = lambda a: jnp.asarray(a, jnp.float32)
    return dict(
        B1=to_j(banded_stacked(w1)), B2=to_j(banded_stacked(w2)),
        amask=to_j(amask), top_ok=to_j(top_ok), bot_ok=to_j(bot_ok),
        rowsel=to_j(rowsel), sel=to_j(sel), selt=to_j(sel.T),
        g1=to_j(np.asarray(g1, np.float32).reshape(1, C)),
        b1=to_j(np.asarray(b1, np.float32).reshape(1, C)),
        g2=to_j(np.asarray(g2, np.float32).reshape(1, C)),
        b2=to_j(np.asarray(b2, np.float32).reshape(1, C)),
    )


def hexagonal_block(x_nchw, params):
    """NCHW in / NCHW out, matching the PyTorch module's forward."""
    N, C, H, W = x_nchw.shape
    NH, WC = N * H, W * C

    # NCHW -> lane-dense (N*H, W*C): channel axis folded onto the 128-lane axis.
    # TODO(synk): keep the model lane-dense NHWC end-to-end at production sizes.
    x_dense = jnp.transpose(x_nchw, (0, 2, 3, 1)).astype(jnp.float32).reshape(NH, WC)

    vmem = pl.BlockSpec(memory_space=pltpu.MemorySpace.VMEM)
    out_dense = pl.pallas_call(
        hexagonal_block_kernel,
        out_shape=jax.ShapeDtypeStruct((NH, WC), jnp.float32),
        in_specs=[vmem] * 13,
        out_specs=vmem,
        # TODO(synk): production path -> grid over N / row tiles with resident weights,
        # two-phase BN, dimension_semantics=("parallel", ...) for v7x's 2 TensorCores,
        # and tile sizes budgeted against 64 MiB VMEM with vmem_limit_bytes set.
    )(x_dense, params["B1"], params["B2"], params["amask"], params["top_ok"],
      params["bot_ok"], params["rowsel"], params["sel"], params["selt"],
      params["g1"], params["b1"], params["g2"], params["b2"])

    return jnp.transpose(out_dense.reshape(N, H, W, C), (0, 3, 1, 2))


def reference_nchw(x, w1, w2, kmask, amask_11hw, g1, b1, g2, b2):
    """Pure-JAX NCHW reference mirroring the PyTorch forward."""
    def conv(xi, w):
        return jax.lax.conv_general_dilated(
            xi, w * kmask[None, None, :, :], (1, 1), ((PH, PH), (PW, PW)),
            dimension_numbers=('NCHW', 'OIHW', 'NCHW'))

    def bn(y, g, b):
        mean = jnp.mean(y, axis=(0, 2, 3), keepdims=True)
        var = jnp.mean(jnp.square(y - mean), axis=(0, 2, 3), keepdims=True)
        return ((y - mean) * jax.lax.rsqrt(var + EPS)
                * g.reshape(1, -1, 1, 1) + b.reshape(1, -1, 1, 1))

    sw = lambda t: t * jax.nn.sigmoid(t)
    h = sw(bn(conv(x, w1), g1, b1)) * amask_11hw
    return sw(bn(conv(h, w2), g2, b2) + x) * amask_11hw


if __name__ == "__main__":
    key = jax.random.PRNGKey(0)
    N, C, H, W = 2, 8, 16, 16   # W*C = 128 -> lane-dense working layout

    k1, k2, k3 = jax.random.split(key, 3)
    x = jax.random.normal(k1, (N, C, H, W), jnp.float32)
    w1 = jax.random.normal(k2, (C, C, KH, KW), jnp.float32) * 0.1
    w2 = jax.random.normal(k3, (C, C, KH, KW), jnp.float32) * 0.1

    # hexagonal 3x5 kernel mask (deterministic)
    kernel_mask = jnp.array([[0, 1, 1, 1, 0],
                             [1, 1, 1, 1, 1],
                             [0, 1, 1, 1, 0]], jnp.float32)

    # deterministic activations mask over the spatial grid
    rows = jnp.arange(H)[:, None]
    cols = jnp.arange(W)[None, :]
    activations_hw = ((rows + cols) % 5 != 0).astype(jnp.float32)   # (H, W)
    amask_11hw = activations_hw.reshape(1, 1, H, W)

    # BatchNorm affine params: PyTorch default init (gamma=1, beta=0)
    g1 = jnp.ones((C,), jnp.float32); b1 = jnp.zeros((C,), jnp.float32)
    g2 = jnp.ones((C,), jnp.float32); b2 = jnp.zeros((C,), jnp.float32)

    # Derived constants built once (not per forward).
    params = make_hexagonal_block_params(w1, w2, kernel_mask, activations_hw,
                                         g1, b1, g2, b2, batch=N)

    out = hexagonal_block(x, params)
    out = jax.block_until_ready(out)

    ref = reference_nchw(x, w1, w2, kernel_mask, amask_11hw, g1, b1, g2, b2)
    np.testing.assert_allclose(np.asarray(out), np.asarray(ref),
                               atol=1e-4, rtol=1e-4)
    print("KERNEL_OK")
</pallas_src>

<mosaic_0001>
module attributes {stable_mosaic.version = 11 : i64} {
  func.func @hexagonal_block_kernel(%arg0: memref<32x128xf32, #tpu.memory_space<vmem>>, %arg1: memref<384x128xf32, #tpu.memory_space<vmem>>, %arg2: memref<384x128xf32, #tpu.memory_space<vmem>>, %arg3: memref<32x128xf32, #tpu.memory_space<vmem>>, %arg4: memref<32x1xf32, #tpu.memory_space<vmem>>, %arg5: memref<32x1xf32, #tpu.memory_space<vmem>>, %arg6: memref<2x1xf32, #tpu.memory_space<vmem>>, %arg7: memref<128x8xf32, #tpu.memory_space<vmem>>, %arg8: memref<8x128xf32, #tpu.memory_space<vmem>>, %arg9: memref<1x8xf32, #tpu.memory_space<vmem>>, %arg10: memref<1x8xf32, #tpu.memory_space<vmem>>, %arg11: memref<1x8xf32, #tpu.memory_space<vmem>>, %arg12: memref<1x8xf32, #tpu.memory_space<vmem>>, %arg13: memref<32x128xf32, #tpu.memory_space<vmem>>) attributes {dimension_semantics = [], scalar_prefetch = 0 : i64, scratch_operands = 0 : i64, tpu.core_type = #tpu.core_type<tc>} {
    %c0 = arith.constant 0 : index
    %c0_0 = arith.constant 0 : index
    %0 = vector.load %arg0[%c0, %c0_0] : memref<32x128xf32, #tpu.memory_space<vmem>>, vector<32x128xf32>
    %c0_1 = arith.constant 0 : index
    %c0_2 = arith.constant 0 : index
    %1 = vector.load %arg3[%c0_1, %c0_2] : memref<32x128xf32, #tpu.memory_space<vmem>>, vector<32x128xf32>
    %c0_3 = arith.constant 0 : index
    %c0_4 = arith.constant 0 : index
    %2 = vector.load %arg4[%c0_3, %c0_4] : memref<32x1xf32, #tpu.memory_space<vmem>>, vector<32x1xf32>
    %c0_5 = arith.constant 0 : index
    %c0_6 = arith.constant 0 : index
    %3 = vector.load %arg5[%c0_5, %c0_6] : memref<32x1xf32, #tpu.memory_space<vmem>>, vector<32x1xf32>
    %c0_7 = arith.constant 0 : index
    %c0_8 = arith.constant 0 : index
    %4 = vector.load %arg6[%c0_7, %c0_8] : memref<2x1xf32, #tpu.memory_space<vmem>>, vector<2x1xf32>
    %c0_9 = arith.constant 0 : index
    %c0_10 = arith.constant 0 : index
    %5 = vector.load %arg7[%c0_9, %c0_10] : memref<128x8xf32, #tpu.memory_space<vmem>>, vector<128x8xf32>
    %c0_11 = arith.constant 0 : index
    %c0_12 = arith.constant 0 : index
    %6 = vector.load %arg8[%c0_11, %c0_12] : memref<8x128xf32, #tpu.memory_space<vmem>>, vector<8x128xf32>
    %c1_i32 = arith.constant 1 : i32
    %7 = tpu.dynamic_rotate %0 by %c1_i32 dim 0 : vector<32x128xf32>, i32 -> vector<32x128xf32>
    %8 = vector.broadcast %2 : vector<32x1xf32> to vector<32x128xf32>
    %9 = arith.mulf %7, %8 : vector<32x128xf32>
    %c31_i32 = arith.constant 31 : i32
    %10 = tpu.dynamic_rotate %0 by %c31_i32 dim 0 : vector<32x128xf32>, i32 -> vector<32x128xf32>
    %11 = vector.broadcast %3 : vector<32x1xf32> to vector<32x128xf32>
    %12 = arith.mulf %10, %11 : vector<32x128xf32>
    %13 = tpu.concatenate %9, %0, %12 in 1 : vector<32x128xf32>, vector<32x128xf32>, vector<32x128xf32> -> vector<32x384xf32>
    %c0_13 = arith.constant 0 : index
    %c0_14 = arith.constant 0 : index
    %14 = vector.load %arg1[%c0_13, %c0_14] : memref<384x128xf32, #tpu.memory_space<vmem>>, vector<384x128xf32>
    %cst = arith.constant dense<0.000000e+00> : vector<32x128xf32>
    %15 = tpu.matmul %13, %14, %cst {dimension_numbers = #tpu.dot_dimension_numbers<[1], [0], [0], [1], [0, 0, 1, 1], [], []>} : vector<32x384xf32>, vector<384x128xf32>, vector<32x128xf32> -> vector<32x128xf32>
    %cst_15 = arith.constant dense<0.000000e+00> : vector<128xf32>
    %16 = vector.multi_reduction <add>, %15, %cst_15 [0] : vector<32x128xf32> to vector<128xf32>
    %17 = vector.shape_cast %16 : vector<128xf32> to vector<1x128xf32>
    %18 = arith.mulf %15, %15 : vector<32x128xf32>
    %cst_16 = arith.constant dense<0.000000e+00> : vector<128xf32>
    %19 = vector.multi_reduction <add>, %18, %cst_16 [0] : vector<32x128xf32> to vector<128xf32>
    %20 = vector.shape_cast %19 : vector<128xf32> to vector<1x128xf32>
    %21 = vector.broadcast %4 : vector<2x1xf32> to vector<2x128xf32>
    %22 = vector.broadcast %17 : vector<1x128xf32> to vector<2x128xf32>
    %23 = arith.mulf %21, %22 : vector<2x128xf32>
    %cst_17 = arith.constant 1.000000e+00 : f32
    %24 = vector.broadcast %cst_17 : f32 to vector<2x1xf32>
    %25 = arith.subf %24, %4 : vector<2x1xf32>
    %26 = vector.broadcast %25 : vector<2x1xf32> to vector<2x128xf32>
    %27 = vector.broadcast %20 : vector<1x128xf32> to vector<2x128xf32>
    %28 = arith.mulf %26, %27 : vector<2x128xf32>
    %29 = arith.addf %23, %28 : vector<2x128xf32>
    %cst_18 = arith.constant dense<0.000000e+00> : vector<2x8xf32>
    %30 = tpu.matmul %29, %5, %cst_18 {dimension_numbers = #tpu.dot_dimension_numbers<[1], [0], [0], [1], [0, 0, 1, 1], [], []>} : vector<2x128xf32>, vector<128x8xf32>, vector<2x8xf32> -> vector<2x8xf32>
    %31 = vector.extract_strided_slice %30 {offsets = [0, 0], sizes = [1, 8], strides = [1, 1]} : vector<2x8xf32> to vector<1x8xf32>
    %cst_19 = arith.constant 0.001953125 : f32
    %32 = vector.broadcast %cst_19 : f32 to vector<1x8xf32>
    %33 = arith.mulf %31, %32 : vector<1x8xf32>
    %34 = vector.extract_strided_slice %30 {offsets = [1, 0], sizes = [1, 8], strides = [1, 1]} : vector<2x8xf32> to vector<1x8xf32>
    %cst_20 = arith.constant 0.001953125 : f32
    %35 = vector.broadcast %cst_20 : f32 to vector<1x8xf32>
    %36 = arith.mulf %34, %35 : vector<1x8xf32>
    %37 = arith.mulf %33, %33 : vector<1x8xf32>
    %38 = arith.subf %36, %37 : vector<1x8xf32>
    %cst_21 = arith.constant 0.000000e+00 : f32
    %39 = vector.broadcast %cst_21 : f32 to vector<1x8xf32>
    %40 = arith.maximumf %38, %39 : vector<1x8xf32>
    %c0_22 = arith.constant 0 : index
    %c0_23 = arith.constant 0 : index
    %41 = vector.load %arg9[%c0_22, %c0_23] : memref<1x8xf32, #tpu.memory_space<vmem>>, vector<1x8xf32>
    %cst_24 = arith.constant 9.99999974E-6 : f32
    %42 = vector.broadcast %cst_24 : f32 to vector<1x8xf32>
    %43 = arith.addf %40, %42 : vector<1x8xf32>
    %44 = math.rsqrt %43 : vector<1x8xf32>
    %45 = arith.mulf %41, %44 : vector<1x8xf32>
    %c0_25 = arith.constant 0 : index
    %c0_26 = arith.constant 0 : index
    %46 = vector.load %arg10[%c0_25, %c0_26] : memref<1x8xf32, #tpu.memory_space<vmem>>, vector<1x8xf32>
    %47 = arith.mulf %33, %45 : vector<1x8xf32>
    %48 = arith.subf %46, %47 : vector<1x8xf32>
    %49 = vector.broadcast %4 : vector<2x1xf32> to vector<2x8xf32>
    %50 = vector.broadcast %45 : vector<1x8xf32> to vector<2x8xf32>
    %51 = arith.mulf %49, %50 : vector<2x8xf32>
    %cst_27 = arith.constant 1.000000e+00 : f32
    %52 = vector.broadcast %cst_27 : f32 to vector<2x1xf32>
    %53 = arith.subf %52, %4 : vector<2x1xf32>
    %54 = vector.broadcast %53 : vector<2x1xf32> to vector<2x8xf32>
    %55 = vector.broadcast %48 : vector<1x8xf32> to vector<2x8xf32>
    %56 = arith.mulf %54, %55 : vector<2x8xf32>
    %57 = arith.addf %51, %56 : vector<2x8xf32>
    %cst_28 = arith.constant dense<0.000000e+00> : vector<2x128xf32>
    %58 = tpu.matmul %57, %6, %cst_28 {dimension_numbers = #tpu.dot_dimension_numbers<[1], [0], [0], [1], [0, 0, 1, 1], [], []>} : vector<2x8xf32>, vector<8x128xf32>, vector<2x128xf32> -> vector<2x128xf32>
    %59 = vector.extract_strided_slice %58 {offsets = [0, 0], sizes = [1, 128], strides = [1, 1]} : vector<2x128xf32> to vector<1x128xf32>
    %60 = vector.broadcast %59 : vector<1x128xf32> to vector<32x128xf32>
    %61 = arith.mulf %15, %60 : vector<32x128xf32>
    %62 = vector.extract_strided_slice %58 {offsets = [1, 0], sizes = [1, 128], strides = [1, 1]} : vector<2x128xf32> to vector<1x128xf32>
    %63 = vector.broadcast %62 : vector<1x128xf32> to vector<32x128xf32>
    %64 = arith.addf %61, %63 : vector<32x128xf32>
    %65 = arith.negf %64 : vector<32x128xf32>
    %66 = math.exp %65 : vector<32x128xf32>
    %cst_29 = arith.constant 1.000000e+00 : f32
    %67 = vector.broadcast %cst_29 : f32 to vector<32x128xf32>
    %68 = arith.addf %67, %66 : vector<32x128xf32>
    %69 = arith.divf %67, %68 : vector<32x128xf32>
    %70 = arith.mulf %64, %69 : vector<32x128xf32>
    %71 = arith.mulf %70, %1 : vector<32x128xf32>
    %c1_i32_30 = arith.constant 1 : i32
    %72 = tpu.dynamic_rotate %71 by %c1_i32_30 dim 0 : vector<32x128xf32>, i32 -> vector<32x128xf32>
    %73 = vector.broadcast %2 : vector<32x1xf32> to vector<32x128xf32>
    %74 = arith.mulf %72, %73 : vector<32x128xf32>
    %c31_i32_31 = arith.constant 31 : i32
    %75 = tpu.dynamic_rotate %71 by %c31_i32_31 dim 0 : vector<32x128xf32>, i32 -> vector<32x128xf32>
    %76 = vector.broadcast %3 : vector<32x1xf32> to vector<32x128xf32>
    %77 = arith.mulf %75, %76 : vector<32x128xf32>
    %78 = tpu.concatenate %74, %71, %77 in 1 : vector<32x128xf32>, vector<32x128xf32>, vector<32x128xf32> -> vector<32x384xf32>
    %c0_32 = arith.constant 0 : index
    %c0_33 = arith.constant 0 : index
    %79 = vector.load %arg2[%c0_32, %c0_33] : memref<384x128xf32, #tpu.memory_space<vmem>>, vector<384x128xf32>
    %cst_34 = arith.constant dense<0.000000e+00> : vector<32x128xf32>
    %80 = tpu.matmul %78, %79, %cst_34 {dimension_numbers = #tpu.dot_dimension_numbers<[1], [0], [0], [1], [0, 0, 1, 1], [], []>} : vector<32x384xf32>, vector<384x128xf32>, vector<32x128xf32> -> vector<32x128xf32>
    %cst_35 = arith.constant dense<0.000000e+00> : vector<128xf32>
    %81 = vector.multi_reduction <add>, %80, %cst_35 [0] : vector<32x128xf32> to vector<128xf32>
    %82 = vector.shape_cast %81 : vector<128xf32> to vector<1x128xf32>
    %83 = arith.mulf %80, %80 : vector<32x128xf32>
    %cst_36 = arith.constant dense<0.000000e+00> : vector<128xf32>
    %84 = vector.multi_reduction <add>, %83, %cst_36 [0] : vector<32x128xf32> to vector<128xf32>
    %85 = vector.shape_cast %84 : vector<128xf32> to vector<1x128xf32>
    %86 = vector.broadcast %4 : vector<2x1xf32> to vector<2x128xf32>
    %87 = vector.broadcast %82 : vector<1x128xf32> to vector<2x128xf32>
    %88 = arith.mulf %86, %87 : vector<2x128xf32>
    %cst_37 = arith.constant 1.000000e+00 : f32
    %89 = vector.broadcast %cst_37 : f32 to vector<2x1xf32>
    %90 = arith.subf %89, %4 : vector<2x1xf32>
    %91 = vector.broadcast %90 : vector<2x1xf32> to vector<2x128xf32>
    %92 = vector.broadcast %85 : vector<1x128xf32> to vector<2x128xf32>
    %93 = arith.mulf %91, %92 : vector<2x128xf32>
    %94 = arith.addf %88, %93 : vector<2x128xf32>
    %cst_38 = arith.constant dense<0.000000e+00> : vector<2x8xf32>
    %95 = tpu.matmul %94, %5, %cst_38 {dimension_numbers = #tpu.dot_dimension_numbers<[1], [0], [0], [1], [0, 0, 1, 1], [], []>} : vector<2x128xf32>, vector<128x8xf32>, vector<2x8xf32> -> vector<2x8xf32>
    %96 = vector.extract_strided_slice %95 {offsets = [0, 0], sizes = [1, 8], strides = [1, 1]} : vector<2x8xf32> to vector<1x8xf32>
    %cst_39 = arith.constant 0.001953125 : f32
    %97 = vector.broadcast %cst_39 : f32 to vector<1x8xf32>
    %98 = arith.mulf %96, %97 : vector<1x8xf32>
    %99 = vector.extract_strided_slice %95 {offsets = [1, 0], sizes = [1, 8], strides = [1, 1]} : vector<2x8xf32> to vector<1x8xf32>
    %cst_40 = arith.constant 0.001953125 : f32
    %100 = vector.broadcast %cst_40 : f32 to vector<1x8xf32>
    %101 = arith.mulf %99, %100 : vector<1x8xf32>
    %102 = arith.mulf %98, %98 : vector<1x8xf32>
    %103 = arith.subf %101, %102 : vector<1x8xf32>
    %cst_41 = arith.constant 0.000000e+00 : f32
    %104 = vector.broadcast %cst_41 : f32 to vector<1x8xf32>
    %105 = arith.maximumf %103, %104 : vector<1x8xf32>
    %c0_42 = arith.constant 0 : index
    %c0_43 = arith.constant 0 : index
    %106 = vector.load %arg11[%c0_42, %c0_43] : memref<1x8xf32, #tpu.memory_space<vmem>>, vector<1x8xf32>
    %cst_44 = arith.constant 9.99999974E-6 : f32
    %107 = vector.broadcast %cst_44 : f32 to vector<1x8xf32>
    %108 = arith.addf %105, %107 : vector<1x8xf32>
    %109 = math.rsqrt %108 : vector<1x8xf32>
    %110 = arith.mulf %106, %109 : vector<1x8xf32>
    %c0_45 = arith.constant 0 : index
    %c0_46 = arith.constant 0 : index
    %111 = vector.load %arg12[%c0_45, %c0_46] : memref<1x8xf32, #tpu.memory_space<vmem>>, vector<1x8xf32>
    %112 = arith.mulf %98, %110 : vector<1x8xf32>
    %113 = arith.subf %111, %112 : vector<1x8xf32>
    %114 = vector.broadcast %4 : vector<2x1xf32> to vector<2x8xf32>
    %115 = vector.broadcast %110 : vector<1x8xf32> to vector<2x8xf32>
    %116 = arith.mulf %114, %115 : vector<2x8xf32>
    %cst_47 = arith.constant 1.000000e+00 : f32
    %117 = vector.broadcast %cst_47 : f32 to vector<2x1xf32>
    %118 = arith.subf %117, %4 : vector<2x1xf32>
    %119 = vector.broadcast %118 : vector<2x1xf32> to vector<2x8xf32>
    %120 = vector.broadcast %113 : vector<1x8xf32> to vector<2x8xf32>
    %121 = arith.mulf %119, %120 : vector<2x8xf32>
    %122 = arith.addf %116, %121 : vector<2x8xf32>
    %cst_48 = arith.constant dense<0.000000e+00> : vector<2x128xf32>
    %123 = tpu.matmul %122, %6, %cst_48 {dimension_numbers = #tpu.dot_dimension_numbers<[1], [0], [0], [1], [0, 0, 1, 1], [], []>} : vector<2x8xf32>, vector<8x128xf32>, vector<2x128xf32> -> vector<2x128xf32>
    %124 = vector.extract_strided_slice %123 {offsets = [0, 0], sizes = [1, 128], strides = [1, 1]} : vector<2x128xf32> to vector<1x128xf32>
    %125 = vector.broadcast %124 : vector<1x128xf32> to vector<32x128xf32>
    %126 = arith.mulf %80, %125 : vector<32x128xf32>
    %127 = vector.extract_strided_slice %123 {offsets = [1, 0], sizes = [1, 128], strides = [1, 1]} : vector<2x128xf32> to vector<1x128xf32>
    %128 = vector.broadcast %127 : vector<1x128xf32> to vector<32x128xf32>
    %129 = arith.addf %126, %128 : vector<32x128xf32>
    %130 = arith.addf %129, %0 : vector<32x128xf32>
    %131 = arith.negf %130 : vector<32x128xf32>
    %132 = math.exp %131 : vector<32x128xf32>
    %cst_49 = arith.constant 1.000000e+00 : f32
    %133 = vector.broadcast %cst_49 : f32 to vector<32x128xf32>
    %134 = arith.addf %133, %132 : vector<32x128xf32>
    %135 = arith.divf %133, %134 : vector<32x128xf32>
    %136 = arith.mulf %130, %135 : vector<32x128xf32>
    %137 = arith.mulf %136, %1 : vector<32x128xf32>
    %c0_50 = arith.constant 0 : index
    %c0_51 = arith.constant 0 : index
    %138 = vector.load %arg13[%c0_50, %c0_51] : memref<32x128xf32, #tpu.memory_space<vmem>>, vector<32x128xf32>
    tpu.vector_store %arg13[%c0_50, %c0_51], %137 {strides = array<i32>} : memref<32x128xf32, #tpu.memory_space<vmem>>, vector<32x128xf32>,
    return
  }
}

</mosaic_0001>

<llo_original>
// kernel: tpu_custom_call.1
$region0: #{tpu_custom_call.1}
  #allocation0 [shape = 'u32[]', space=smem, size = 0x4, offset = 0x4, fixed_abs, tag = 'smem constant byte address 0x4 - core index']
  #allocation1 [shape = 'u32[144,128]{1,0:T(1,128)}', space=vmem, size = 0x12000, scoped, tag = 'internal scratch']
  %s0 = inlined_call_operand.vmem [shape: f32[32,128], index: 0, kind: input, shape index: {}]
  %s1 = inlined_call_operand.hbm [shape: f32[384,128], index: 1, kind: input, shape index: {}]
  %s2 = inlined_call_operand.hbm [shape: f32[384,128], index: 2, kind: input, shape index: {}]
  %s3 = inlined_call_operand.vmem [shape: f32[32,128], index: 3, kind: input, shape index: {}]
  %s4 = inlined_call_operand.vmem [shape: f32[32,1], index: 4, kind: input, shape index: {}]
  %s5 = inlined_call_operand.vmem [shape: f32[32,1], index: 5, kind: input, shape index: {}]
  %s6 = inlined_call_operand.vmem [shape: f32[2,1], index: 6, kind: input, shape index: {}]
  %s7 = inlined_call_operand.vmem [shape: f32[128,8], index: 7, kind: input, shape index: {}]
  %s8 = inlined_call_operand.vmem [shape: f32[8,128], index: 8, kind: input, shape index: {}]
  %s9 = inlined_call_operand.vmem [shape: f32[1,8], index: 9, kind: input, shape index: {}]
  %s10 = inlined_call_operand.vmem [shape: f32[1,8], index: 10, kind: input, shape index: {}]
  %s11 = inlined_call_operand.vmem [shape: f32[1,8], index: 11, kind: input, shape index: {}]
  %s12 = inlined_call_operand.vmem [shape: f32[1,8], index: 12, kind: input, shape index: {}]
  %s13 = inlined_call_operand.hbm [shape: f32[32,128], index: 13, kind: output, shape index: {}]
  %s14 = sld [smem:[#allocation0]]
  $region70: #{tpu_custom_call.1} parent=0
    _
  %s16 = ssub.s32 1, %s14
  %s17 = scalar_select 0, %s16, %s14
  $region1: #{tpu_custom_call.1} parent=0
    #allocation2 [shape = 'u8[196608]{0}', space=vmem, size = 0x30000, scoped, tag = 'input window, operand 1, single buffered']
    #allocation3 [shape = 's32[1]{0}', space=sflag, size = 0x4, scoped, tag = 'scoped memory for tpu_custom_call.1']
    #allocation4 [shape = 's32[1]{0}', space=sflag, size = 0x4, scoped, tag = 'scoped memory for tpu_custom_call.1']
    #allocation5 [shape = 'u8[196608]{0}', space=vmem, size = 0x30000, scoped, tag = 'input window, operand 2, single buffered']
    #allocation6 [shape = 's32[1]{0}', space=sflag, size = 0x4, scoped, tag = 'scoped memory for tpu_custom_call.1']
    #allocation7 [shape = 'u8[16384]{0}', space=vmem, size = 0x4000, scoped, tag = 'output window, operand 0, single buffered']
    %18 = vsyncpa [#allocation3], 0
    %19 = vsyncpa [#allocation6], 0
    %20 = vsyncpa [#allocation4], 0
    // Predicated region
    $region2: #{tpu_custom_call.1} parent=1 // pred_check
      _
    $region3: #{tpu_custom_call.1} parent=1 // pred_check_branch
      %22 = sbr.rel (0) target = $region5
    $region4: #{tpu_custom_call.1} parent=1 // pred_region
      _
    $region5: #{tpu_custom_call.1} parent=1 // pred_fallthru
      _
    // Predicated region
    $region6: #{tpu_custom_call.1} parent=1 // pred_check
      _
    $region7: #{tpu_custom_call.1} parent=1 // pred_check_branch
      %24 = sbr.rel (0) target = $region9
    $region8: #{tpu_custom_call.1} parent=1 // pred_region
      %s26 = ssub.s32 6144, 6144
      %27 = vsyncadd [#allocation3], %s26
      %s28 = sshll.u32 [#allocation2], 4
      %s29 = int_to_ptr.vmem [resolvable:$true] %s28
      %34 = dma.hbm_to_vmem [thread:$0]  %s1, 6144, %s29, [#allocation3], 128, 128, 8
    $region9: #{tpu_custom_call.1} parent=1 // pred_fallthru
      _
    // Predicated region
    $region10: #{tpu_custom_call.1} parent=1 // pred_check
      _
    $region11: #{tpu_custom_call.1} parent=1 // pred_check_branch
      %36 = sbr.rel (0) target = $region13
    $region12: #{tpu_custom_call.1} parent=1 // pred_region
      %s38 = ssub.s32 6144, 6144
      %39 = vsyncadd [#allocation6], %s38
      %s40 = sshll.u32 [#allocation5], 4
      %s41 = int_to_ptr.vmem [resolvable:$true] %s40
      %46 = dma.hbm_to_vmem [thread:$0]  %s2, 6144, %s41, [#allocation6], 128, 128, 8
    $region13: #{tpu_custom_call.1} parent=1 // pred_fallthru
      _
    // Predicated region
    $region14: #{tpu_custom_call.1} parent=1 // pred_check
      _
    $region15: #{tpu_custom_call.1} parent=1 // pred_check_branch
      %48 = sbr.rel (0) target = $region17
    $region16: #{tpu_custom_call.1} parent=1 // pred_region
      _
    $region17: #{tpu_custom_call.1} parent=1 // pred_fallthru
      _
    // Predicated region
    $region18: #{tpu_custom_call.1} parent=1 // pred_check
      _
    $region19: #{tpu_custom_call.1} parent=1 // pred_check_branch
      %50 = sbr.rel (0) target = $region21
    $region20: #{tpu_custom_call.1} parent=1 // pred_region
      _
    $region21: #{tpu_custom_call.1} parent=1 // pred_fallthru
      _
    // Predicated region
    $region22: #{tpu_custom_call.1} parent=1 // pred_check
      _
    $region23: #{tpu_custom_call.1} parent=1 // pred_check_branch
      %52 = sbr.rel (0) target = $region25
    $region24: #{tpu_custom_call.1} parent=1 // pred_region
      _
    $region25: #{tpu_custom_call.1} parent=1 // pred_fallthru
      _
    // Predicated region
    $region26: #{tpu_custom_call.1} parent=1 // pred_check
      _
    $region27: #{tpu_custom_call.1} parent=1 // pred_check_branch
      %54 = sbr.rel (0) target = $region29
    $region28: #{tpu_custom_call.1} parent=1 // pred_region
      _
    $region29: #{tpu_custom_call.1} parent=1 // pred_fallthru
      _
    // Predicated region
    $region30: #{tpu_custom_call.1} parent=1 // pred_check
      _
    $region31: #{tpu_custom_call.1} parent=1 // pred_check_branch
      %56 = sbr.rel (0) target = $region33
    $region32: #{tpu_custom_call.1} parent=1 // pred_region
      _
    $region33: #{tpu_custom_call.1} parent=1 // pred_fallthru
      _
    // Predicated region
    $region34: #{tpu_custom_call.1} parent=1 // pred_check
      _
    $region35: #{tpu_custom_call.1} parent=1 // pred_check_branch
      %58 = sbr.rel (0) target = $region37
    $region36: #{tpu_custom_call.1} parent=1 // pred_region
      _
    $region37: #{tpu_custom_call.1} parent=1 // pred_fallthru
      _
    // Predicated region
    $region38: #{tpu_custom_call.1} parent=1 // pred_check
      _
    $region39: #{tpu_custom_call.1} parent=1 // pred_check_branch
      %60 = sbr.rel (0) target = $region41
    $region40: #{tpu_custom_call.1} parent=1 // pred_region
      _
    $region41: #{tpu_custom_call.1} parent=1 // pred_fallthru
      _
    // Predicated region
    $region42: #{tpu_custom_call.1} parent=1 // pred_check
      _
    $region43: #{tpu_custom_call.1} parent=1 // pred_check_branch
      %62 = sbr.rel (0) target = $region45
    $region44: #{tpu_custom_call.1} parent=1 // pred_region
      _
    $region45: #{tpu_custom_call.1} parent=1 // pred_fallthru
      _
    // Predicated region
    $region46: #{tpu_custom_call.1} parent=1 // pred_check
      _
    $region47: #{tpu_custom_call.1} parent=1 // pred_check_branch
      %64 = sbr.rel (0) target = $region49
    $region48: #{tpu_custom_call.1} parent=1 // pred_region
      _
    $region49: #{tpu_custom_call.1} parent=1 // pred_fallthru
      _
    // Predicated region
    $region50: #{tpu_custom_call.1} parent=1 // pred_check
      _
    $region51: #{tpu_custom_call.1} parent=1 // pred_check_branch
      %66 = sbr.rel (0) target = $region53
    $region52: #{tpu_custom_call.1} parent=1 // pred_region
      _
    $region53: #{tpu_custom_call.1} parent=1 // pred_fallthru
      _
    // Predicated region
    $region54: #{tpu_custom_call.1} parent=1 // pred_check
      _
    $region55: #{tpu_custom_call.1} parent=1 // pred_check_branch
      %68 = sbr.rel (0) target = $region57
    $region56: #{tpu_custom_call.1} parent=1 // pred_region
      %69 = dma.done [#allocation3], 6144
    $region57: #{tpu_custom_call.1} parent=1 // pred_fallthru
      _
    // Predicated region
    $region58: #{tpu_custom_call.1} parent=1 // pred_check
      _
    $region59: #{tpu_custom_call.1} parent=1 // pred_check_branch
      %71 = sbr.rel (0) target = $region61
    $region60: #{tpu_custom_call.1} parent=1 // pred_region
      %72 = dma.done [#allocation6], 6144
    $region61: #{tpu_custom_call.1} parent=1 // pred_fallthru
      _
    %v73 = vld [vmem:[%s0] sm:$0xff]
    %v74 = vld [vmem:[%s0 + $0x8] sm:$0xff]
    %v75 = vld [vmem:[%s0 + $0x10] sm:$0xff]
    %v76 = vld [vmem:[%s0 + $0x18] sm:$0xff]
    %v77 = vld [vmem:[%s3] sm:$0xff]
    %v78 = vld [vmem:[%s3 + $0x8] sm:$0xff]
    %v79 = vld [vmem:[%s3 + $0x10] sm:$0xff]
    %v80 = vld [vmem:[%s3 + $0x18] sm:$0xff]
    %v81 = vld [vmem:[%s4] sm:$0xff]
    %v82 = vld [vmem:[%s4 + $0x8] sm:$0xff]
    %v83 = vld [vmem:[%s4 + $0x10] sm:$0xff]
    %v84 = vld [vmem:[%s4 + $0x18] sm:$0xff]
    %v85 = vld [vmem:[%s5] sm:$0xff]
    %v86 = vld [vmem:[%s5 + $0x8] sm:$0xff]
    %v87 = vld [vmem:[%s5 + $0x10] sm:$0xff]
    %v88 = vld [vmem:[%s5 + $0x18] sm:$0xff]
    %v89 = vld [vmem:[%s6] sm:$0x3]
    %v90 = vld [vmem:[%s7] sm:$0xff]
    %v91 = vld [vmem:[%s7 + $0x8] sm:$0xff]
    %v92 = vld [vmem:[%s7 + $0x10] sm:$0xff]
    %v93 = vld [vmem:[%s7 + $0x18] sm:$0xff]
    %v94 = vld [vmem:[%s7 + $0x20] sm:$0xff]
    %v95 = vld [vmem:[%s7 + $0x28] sm:$0xff]
    %v96 = vld [vmem:[%s7 + $0x30] sm:$0xff]
    %v97 = vld [vmem:[%s7 + $0x38] sm:$0xff]
    %v98 = vld [vmem:[%s7 + $0x40] sm:$0xff]
    %v99 = vld [vmem:[%s7 + $0x48] sm:$0xff]
    %v100 = vld [vmem:[%s7 + $0x50] sm:$0xff]
    %v101 = vld [vmem:[%s7 + $0x58] sm:$0xff]
    %v102 = vld [vmem:[%s7 + $0x60] sm:$0xff]
    %v103 = vld [vmem:[%s7 + $0x68] sm:$0xff]
    %v104 = vld [vmem:[%s7 + $0x70] sm:$0xff]
    %v105 = vld [vmem:[%s7 + $0x78] sm:$0xff]
    %v106 = vld [vmem:[%s8] sm:$0xff]
    %v107 = vrot.slane %v73, 7
    %v108 = vrot.slane %v74, 7
    %v109 = vrot.slane %v75, 7
    %v110 = vrot.slane %v76, 7
    %v111 = vlaneseq
    %v112 = vshrl.u32 %v111, 7
    %vm113 = vcmp.lt.s32.totalorder %v112, 1
    %v114 = vsel %vm113, %v109, %v110
    %v115 = vsel %vm113, %v108, %v109
    %v116 = vsel %vm113, %v107, %v108
    %v117 = vsel %vm113, %v110, %v107
    %119 = vset.pattern.permute.xlu0 0
    %120 = vperm.xlu0 %119, %v81
    %v121 = vpop.permute.xlu0 %120
    %124 = vset.pattern.permute.xlu0 0
    %125 = vperm.xlu0 %124, %v82
    %v126 = vpop.permute.xlu0 %125
    %129 = vset.pattern.permute.xlu0 0
    %130 = vperm.xlu0 %129, %v83
    %v131 = vpop.permute.xlu0 %130
    %134 = vset.pattern.permute.xlu0 0
    %135 = vperm.xlu0 %134, %v84
    %v136 = vpop.permute.xlu0 %135
    %v138 = vmul.f32 %v117, %v121
    %v139 = vmul.f32 %v116, %v126
    %v140 = vmul.f32 %v115, %v131
    %v141 = vmul.f32 %v114, %v136
    %v142 = vrot.slane %v73, 1
    %v143 = vrot.slane %v74, 1
    %v144 = vrot.slane %v75, 1
    %v145 = vrot.slane %v76, 1
    %vm146 = vcmp.lt.s32.totalorder %v112, 7
    %v147 = vsel %vm146, %v144, %v145
    %v148 = vsel %vm146, %v143, %v144
    %v149 = vsel %vm146, %v142, %v143
    %v150 = vsel %vm146, %v145, %v142
    %152 = vset.pattern.permute.xlu0 0
    %153 = vperm.xlu0 %152, %v85
    %v154 = vpop.permute.xlu0 %153
    %157 = vset.pattern.permute.xlu0 0
    %158 = vperm.xlu0 %157, %v86
    %v159 = vpop.permute.xlu0 %158
    %162 = vset.pattern.permute.xlu0 0
    %163 = vperm.xlu0 %162, %v87
    %v164 = vpop.permute.xlu0 %163
    %167 = vset.pattern.permute.xlu0 0
    %168 = vperm.xlu0 %167, %v88
    %v169 = vpop.permute.xlu0 %168
    %v171 = vmul.f32 %v149, %v154
    %v172 = vmul.f32 %v148, %v159
    %v173 = vmul.f32 %v147, %v164
    %v174 = vmul.f32 %v150, %v169
    %v175 = vld [vmem:[#allocation2] sm:$0xff]
    %v176 = vld [vmem:[#allocation2 + $0x8] sm:$0xff]
    %v177 = vld [vmem:[#allocation2 + $0x10] sm:$0xff]
    %v178 = vld [vmem:[#allocation2 + $0x18] sm:$0xff]
    %v179 = vld [vmem:[#allocation2 + $0x20] sm:$0xff]
    %v180 = vld [vmem:[#allocation2 + $0x28] sm:$0xff]
    %v181 = vld [vmem:[#allocation2 + $0x30] sm:$0xff]
    %v182 = vld [vmem:[#allocation2 + $0x38] sm:$0xff]
    %v183 = vld [vmem:[#allocation2 + $0x40] sm:$0xff]
    %v184 = vld [vmem:[#allocation2 + $0x48] sm:$0xff]
    %v185 = vld [vmem:[#allocation2 + $0x50] sm:$0xff]
    %v186 = vld [vmem:[#allocation2 + $0x58] sm:$0xff]
    %v187 = vld [vmem:[#allocation2 + $0x60] sm:$0xff]
    %v188 = vld [vmem:[#allocation2 + $0x68] sm:$0xff]
    %v189 = vld [vmem:[#allocation2 + $0x70] sm:$0xff]
    %v190 = vld [vmem:[#allocation2 + $0x78] sm:$0xff]
    %v191 = vld [vmem:[#allocation2 + $0x80] sm:$0xff]
    %v192 = vld [vmem:[#allocation2 + $0x88] sm:$0xff]
    %v193 = vld [vmem:[#allocation2 + $0x90] sm:$0xff]
    %v194 = vld [vmem:[#allocation2 + $0x98] sm:$0xff]
    %v195 = vld [vmem:[#allocation2 + $0xa0] sm:$0xff]
    %v196 = vld [vmem:[#allocation2 + $0xa8] sm:$0xff]
    %v197 = vld [vmem:[#allocation2 + $0xb0] sm:$0xff]
    %v198 = vld [vmem:[#allocation2 + $0xb8] sm:$0xff]
    %v199 = vld [vmem:[#allocation2 + $0xc0] sm:$0xff]
    %v200 = vld [vmem:[#allocation2 + $0xc8] sm:$0xff]
    %v201 = vld [vmem:[#allocation2 + $0xd0] sm:$0xff]
    %v202 = vld [vmem:[#allocation2 + $0xd8] sm:$0xff]
    %v203 = vld [vmem:[#allocation2 + $0xe0] sm:$0xff]
    %v204 = vld [vmem:[#allocation2 + $0xe8] sm:$0xff]
    %v205 = vld [vmem:[#allocation2 + $0xf0] sm:$0xff]
    %v206 = vld [vmem:[#allocation2 + $0xf8] sm:$0xff]
    %v207 = vld [vmem:[#allocation2 + $0x100] sm:$0xff]
    %v208 = vld [vmem:[#allocation2 + $0x108] sm:$0xff]
    %v209 = vld [vmem:[#allocation2 + $0x110] sm:$0xff]
    %v210 = vld [vmem:[#allocation2 + $0x118] sm:$0xff]
    %v211 = vld [vmem:[#allocation2 + $0x120] sm:$0xff]
    %v212 = vld [vmem:[#allocation2 + $0x128] sm:$0xff]
    %v213 = vld [vmem:[#allocation2 + $0x130] sm:$0xff]
    %v214 = vld [vmem:[#allocation2 + $0x138] sm:$0xff]
    %v215 = vld [vmem:[#allocation2 + $0x140] sm:$0xff]
    %v216 = vld [vmem:[#allocation2 + $0x148] sm:$0xff]
    %v217 = vld [vmem:[#allocation2 + $0x150] sm:$0xff]
    %v218 = vld [vmem:[#allocation2 + $0x158] sm:$0xff]
    %v219 = vld [vmem:[#allocation2 + $0x160] sm:$0xff]
    %v220 = vld [vmem:[#allocation2 + $0x168] sm:$0xff]
    %v221 = vld [vmem:[#allocation2 + $0x170] sm:$0xff]
    %v222 = vld [vmem:[#allocation2 + $0x178] sm:$0xff]
    %223 = vmatprep.subr.mxu0 0.0
    %224 = vmatpush1.msra.mxu0 %v190
    %225 = vmatprep.subr.mxu0 0.0
    %226 = vmatpush1.msra.mxu0 %v189
    %227 = vmatprep.subr.mxu0 0.0
    %228 = vmatpush1.msra.mxu0 %v188
    %229 = vmatprep.subr.mxu0 0.0
    %230 = vmatpush1.msra.mxu0 %v187
    %231 = vmatprep.subr.mxu0 0.0
    %232 = vmatpush1.msra.mxu0 %v186
    %233 = vmatprep.subr.mxu0 0.0
    %234 = vmatpush1.msra.mxu0 %v185
    %235 = vmatprep.subr.mxu0 0.0
    %236 = vmatpush1.msra.mxu0 %v184
    %237 = vmatprep.subr.mxu0 0.0
    %238 = vmatpush1.msra.mxu0 %v183
    %239 = vmatprep.subr.mxu0 0.0
    %240 = vmatpush1.msra.mxu0 %v182
    %241 = vmatprep.subr.mxu0 0.0
    %242 = vmatpush1.msra.mxu0 %v181
    %243 = vmatprep.subr.mxu0 0.0
    %244 = vmatpush1.msra.mxu0 %v180
    %245 = vmatprep.subr.mxu0 0.0
    %246 = vmatpush1.msra.mxu0 %v179
    %247 = vmatprep.subr.mxu0 0.0
    %248 = vmatpush1.msra.mxu0 %v178
    %249 = vmatprep.subr.mxu0 0.0
    %250 = vmatpush1.msra.mxu0 %v177
    %251 = vmatprep.subr.mxu0 0.0
    %252 = vmatpush1.msra.mxu0 %v176
    %253 = vmatprep.subr.mxu0 0.0
    %254 = vmatpush1.msra.mxu0 %v175
    %255 = vmatprep.subr.mxu0 0.0
    %256 = vmatpush2.msra.mxu0 %v206
    %257 = vmatprep.subr.mxu0 0.0
    %258 = vmatpush2.msra.mxu0 %v205
    %259 = vmatprep.subr.mxu0 0.0
    %260 = vmatpush2.msra.mxu0 %v204
    %261 = vmatprep.subr.mxu0 0.0
    %262 = vmatpush2.msra.mxu0 %v203
    %263 = vmatprep.subr.mxu0 0.0
    %264 = vmatpush2.msra.mxu0 %v202
    %265 = vmatprep.subr.mxu0 0.0
    %266 = vmatpush2.msra.mxu0 %v201
    %267 = vmatprep.subr.mxu0 0.0
    %268 = vmatpush2.msra.mxu0 %v200
    %269 = vmatprep.subr.mxu0 0.0
    %270 = vmatpush2.msra.mxu0 %v199
    %271 = vmatprep.subr.mxu0 0.0
    %272 = vmatpush2.msra.mxu0 %v198
    %273 = vmatprep.subr.mxu0 0.0
    %274 = vmatpush2.msra.mxu0 %v197
    %275 = vmatprep.subr.mxu0 0.0
    %276 = vmatpush2.msra.mxu0 %v196
    %277 = vmatprep.subr.mxu0 0.0
    %278 = vmatpush2.msra.mxu0 %v195
    %279 = vmatprep.subr.mxu0 0.0
    %280 = vmatpush2.msra.mxu0 %v194
    %281 = vmatprep.subr.mxu0 0.0
    %282 = vmatpush2.msra.mxu0 %v193
    %283 = vmatprep.subr.mxu0 0.0
    %284 = vmatpush2.msra.mxu0 %v192
    %285 = vmatprep.subr.mxu0 0.0
    %286 = vmatpush2.msra.mxu0 %v191
    %287 = vmatprep.mubr.f32.mxu0 %v73
    %288 = vmatmul.mubr.f32.gmra.mxu0 %v138
    %v289 = vpop.f32.mrf.mxu0
    %v290 = vadd.f32 0.0, %v289
    %v291 = vpop.f32.mrf.mxu0
    %292 = vmatprep.mubr.f32.mxu0 %v74
    %293 = vmatmul.mubr.f32.gmra.mxu0 %v139
    %v294 = vpop.f32.mrf.mxu0
    %v295 = vadd.f32 0.0, %v294
    %v296 = vpop.f32.mrf.mxu0
    %297 = vmatprep.mubr.f32.mxu0 %v75
    %298 = vmatmul.mubr.f32.gmra.mxu0 %v140
    %v299 = vpop.f32.mrf.mxu0
    %v300 = vadd.f32 0.0, %v299
    %v301 = vpop.f32.mrf.mxu0
    %302 = vmatprep.mubr.f32.mxu0 %v76
    %303 = vmatmul.mubr.f32.gmra.mxu0 %v141
    %v304 = vpop.f32.mrf.mxu0
    %v305 = vadd.f32 0.0, %v304
    %v306 = vpop.f32.mrf.mxu0
    %307 = vdwg.mxu0
    %308 = vmatprep.subr.mxu0 0.0
    %309 = vmatpush1.msra.mxu0 %v222
    %310 = vmatprep.subr.mxu0 0.0
    %311 = vmatpush1.msra.mxu0 %v221
    %312 = vmatprep.subr.mxu0 0.0
    %313 = vmatpush1.msra.mxu0 %v220
    %314 = vmatprep.subr.mxu0 0.0
    %315 = vmatpush1.msra.mxu0 %v219
    %316 = vmatprep.subr.mxu0 0.0
    %317 = vmatpush1.msra.mxu0 %v218
    %318 = vmatprep.subr.mxu0 0.0
    %319 = vmatpush1.msra.mxu0 %v217
    %320 = vmatprep.subr.mxu0 0.0
    %321 = vmatpush1.msra.mxu0 %v216
    %322 = vmatprep.subr.mxu0 0.0
    %323 = vmatpush1.msra.mxu0 %v215
    %324 = vmatprep.subr.mxu0 0.0
    %325 = vmatpush1.msra.mxu0 %v214
    %326 = vmatprep.subr.mxu0 0.0
    %327 = vmatpush1.msra.mxu0 %v213
    %328 = vmatprep.subr.mxu0 0.0
    %329 = vmatpush1.msra.mxu0 %v212
    %330 = vmatprep.subr.mxu0 0.0
    %331 = vmatpush1.msra.mxu0 %v211
    %332 = vmatprep.subr.mxu0 0.0
    %333 = vmatpush1.msra.mxu0 %v210
    %334 = vmatprep.subr.mxu0 0.0
    %335 = vmatpush1.msra.mxu0 %v209
    %336 = vmatprep.subr.mxu0 0.0
    %337 = vmatpush1.msra.mxu0 %v208
    %338 = vmatprep.subr.mxu0 0.0
    %339 = vmatpush1.msra.mxu0 %v207
    %340 = vmatprep.subr.mxu0 0.0
    %341 = vmatpush2.msra.mxu0 0.0
    %342 = vmatprep.subr.mxu0 0.0
    %343 = vmatpush2.msra.mxu0 0.0
    %344 = vmatprep.subr.mxu0 0.0
    %345 = vmatpush2.msra.mxu0 0.0
    %346 = vmatprep.subr.mxu0 0.0
    %347 = vmatpush2.msra.mxu0 0.0
    %348 = vmatprep.subr.mxu0 0.0
    %349 = vmatpush2.msra.mxu0 0.0
    %350 = vmatprep.subr.mxu0 0.0
    %351 = vmatpush2.msra.mxu0 0.0
    %352 = vmatprep.subr.mxu0 0.0
    %353 = vmatpush2.msra.mxu0 0.0
    %354 = vmatprep.subr.mxu0 0.0
    %355 = vmatpush2.msra.mxu0 0.0
    %356 = vmatprep.subr.mxu0 0.0
    %357 = vmatpush2.msra.mxu0 0.0
    %358 = vmatprep.subr.mxu0 0.0
    %359 = vmatpush2.msra.mxu0 0.0
    %360 = vmatprep.subr.mxu0 0.0
    %361 = vmatpush2.msra.mxu0 0.0
    %362 = vmatprep.subr.mxu0 0.0
    %363 = vmatpush2.msra.mxu0 0.0
    %364 = vmatprep.subr.mxu0 0.0
    %365 = vmatpush2.msra.mxu0 0.0
    %366 = vmatprep.subr.mxu0 0.0
    %367 = vmatpush2.msra.mxu0 0.0
    %368 = vmatprep.subr.mxu0 0.0
    %369 = vmatpush2.msra.mxu0 0.0
    %370 = vmatprep.subr.mxu0 0.0
    %371 = vmatpush2.msra.mxu0 0.0
    %372 = vmatprep.mubr.f32.mxu0 0.0
    %373 = vmatmul.mubr.f32.gmra.mxu0 %v171
    %v374 = vpop.f32.mrf.mxu0
    %v375 = vadd.f32 %v290, %v374
    %v376 = vpop.f32.mrf.mxu0
    %377 = vmatprep.mubr.f32.mxu0 0.0
    %378 = vmatmul.mubr.f32.gmra.mxu0 %v172
    %v379 = vpop.f32.mrf.mxu0
    %v380 = vadd.f32 %v295, %v379
    %v381 = vpop.f32.mrf.mxu0
    %382 = vmatprep.mubr.f32.mxu0 0.0
    %383 = vmatmul.mubr.f32.gmra.mxu0 %v173
    %v384 = vpop.f32.mrf.mxu0
    %v385 = vadd.f32 %v300, %v384
    %v386 = vpop.f32.mrf.mxu0
    %387 = vmatprep.mubr.f32.mxu0 0.0
    %388 = vmatmul.mubr.f32.gmra.mxu0 %v174
    %v389 = vpop.f32.mrf.mxu0
    %v390 = vadd.f32 %v305, %v389
    %v391 = vpop.f32.mrf.mxu0
    %392 = vdwg.mxu0
    %v393 = vadd.f32 %v375, %v380
    %v394 = vadd.f32 %v393, %v385
    %v395 = vadd.f32 %v394, %v390
    %v396 = vrot.slane %v395, 4
    %v397 = vadd.f32 %v395, %v396
    %v398 = vrot.slane %v397, 2
    %v399 = vadd.f32 %v397, %v398
    %v400 = vrot.slane %v399, 1
    %v401 = vadd.f32 %v399, %v400
    %v402 = vmul.f32 %v375, %v375
    %v403 = vmul.f32 %v380, %v380
    %v404 = vmul.f32 %v385, %v385
    %v405 = vmul.f32 %v390, %v390
    %v406 = vadd.f32 %v402, %v403
    %v407 = vadd.f32 %v406, %v404
    %v408 = vadd.f32 %v407, %v405
    %v409 = vrot.slane %v408, 4
    %v410 = vadd.f32 %v408, %v409
    %v411 = vrot.slane %v410, 2
    %v412 = vadd.f32 %v410, %v411
    %v413 = vrot.slane %v412, 1
    %v414 = vadd.f32 %v412, %v413
    %416 = vset.pattern.permute.xlu0 0
    %417 = vperm.xlu0 %416, %v89
    %v418 = vpop.permute.xlu0 %417
    %v420 = vmul.f32 %v418, %v401
    %v421 = vsub.f32 1.0, %v89
    %423 = vset.pattern.permute.xlu0 0
    %424 = vperm.xlu0 %423, %v421
    %v425 = vpop.permute.xlu0 %424
    %v427 = vmul.f32 %v425, %v414
    %v428 = vadd.f32 %v420, %v427
    %429 = vmatprep.subr.mxu0 0.0
    %430 = vmatpush1.msra.mxu0 %v105
    %431 = vmatprep.subr.mxu0 0.0
    %432 = vmatpush1.msra.mxu0 %v104
    %433 = vmatprep.subr.mxu0 0.0
    %434 = vmatpush1.msra.mxu0 %v103
    %435 = vmatprep.subr.mxu0 0.0
    %436 = vmatpush1.msra.mxu0 %v102
    %437 = vmatprep.subr.mxu0 0.0
    %438 = vmatpush1.msra.mxu0 %v101
    %439 = vmatprep.subr.mxu0 0.0
    %440 = vmatpush1.msra.mxu0 %v100
    %441 = vmatprep.subr.mxu0 0.0
    %442 = vmatpush1.msra.mxu0 %v99
    %443 = vmatprep.subr.mxu0 0.0
    %444 = vmatpush1.msra.mxu0 %v98
    %445 = vmatprep.subr.mxu0 0.0
    %446 = vmatpush1.msra.mxu0 %v97
    %447 = vmatprep.subr.mxu0 0.0
    %448 = vmatpush1.msra.mxu0 %v96
    %449 = vmatprep.subr.mxu0 0.0
    %450 = vmatpush1.msra.mxu0 %v95
    %451 = vmatprep.subr.mxu0 0.0
    %452 = vmatpush1.msra.mxu0 %v94
    %453 = vmatprep.subr.mxu0 0.0
    %454 = vmatpush1.msra.mxu0 %v93
    %455 = vmatprep.subr.mxu0 0.0
    %456 = vmatpush1.msra.mxu0 %v92
    %457 = vmatprep.subr.mxu0 0.0
    %458 = vmatpush1.msra.mxu0 %v91
    %459 = vmatprep.subr.mxu0 0.0
    %460 = vmatpush1.msra.mxu0 %v90
    %461 = vmatprep.subr.mxu0 0.0
    %462 = vmatpush2.msra.mxu0 0.0
    %463 = vmatprep.subr.mxu0 0.0
    %464 = vmatpush2.msra.mxu0 0.0
    %465 = vmatprep.subr.mxu0 0.0
    %466 = vmatpush2.msra.mxu0 0.0
    %467 = vmatprep.subr.mxu0 0.0
    %468 = vmatpush2.msra.mxu0 0.0
    %469 = vmatprep.subr.mxu0 0.0
    %470 = vmatpush2.msra.mxu0 0.0
    %471 = vmatprep.subr.mxu0 0.0
    %472 = vmatpush2.msra.mxu0 0.0
    %473 = vmatprep.subr.mxu0 0.0
    %474 = vmatpush2.msra.mxu0 0.0
    %475 = vmatprep.subr.mxu0 0.0
    %476 = vmatpush2.msra.mxu0 0.0
    %477 = vmatprep.subr.mxu0 0.0
    %478 = vmatpush2.msra.mxu0 0.0
    %479 = vmatprep.subr.mxu0 0.0
    %480 = vmatpush2.msra.mxu0 0.0
    %481 = vmatprep.subr.mxu0 0.0
    %482 = vmatpush2.msra.mxu0 0.0
    %483 = vmatprep.subr.mxu0 0.0
    %484 = vmatpush2.msra.mxu0 0.0
    %485 = vmatprep.subr.mxu0 0.0
    %486 = vmatpush2.msra.mxu0 0.0
    %487 = vmatprep.subr.mxu0 0.0
    %488 = vmatpush2.msra.mxu0 0.0
    %489 = vmatprep.subr.mxu0 0.0
    %490 = vmatpush2.msra.mxu0 0.0
    %491 = vmatprep.subr.mxu0 0.0
    %492 = vmatpush2.msra.mxu0 0.0
    %493 = vmatprep.mubr.f32.mxu0 0.0
    %494 = vmatmul.mubr.f32.gmra.mxu0 %v428
    %v495 = vpop.f32.mrf.mxu0
    %v496 = vadd.f32 0.0, %v495
    %v497 = vpop.f32.mrf.mxu0
    %498 = vdwg.mxu0
    %v499 = vmul.f32 %v496, 0.001953125
    %v500 = vmul.f32 %v499, %v499
    %v502 = vrot.slane %v500, 7
    %v504 = vsub.f32 %v499, %v502
    %v505 = vmax.f32 %v504, 0.0
    %v506 = vld [vmem:[%s9] sm:$0x1]
    %v507 = vadd.f32 %v505, 1e-05
    %v508 = vrsqrt.pop %v507
    %v511 = vunpack.c.l.s4 1966171168
    %v512 = vunpack.c.0.s8 %v511
    %v513 = vlaneseq
    %v514 = vshrl.u32 %v513, 7
    %v515 = vsub.s32 %v512, %v514
    %v516 = vrot.slane %v508, %v515
    %v517 = vcombine.high %v516, %v516
    %v519 = vunpack.c.l.s4 1966171168
    %v520 = vunpack.c.0.s8 %v519
    %v521 = vlaneseq
    %v522 = vshrl.u32 %v521, 7
    %v523 = vsub.s32 %v520, %v522
    %v524 = vrot.slane %v517, %v523
    %v526 = vmul.f32 %v506, %v524
    %v527 = vld [vmem:[%s10] sm:$0x1]
    %v528 = vmul.f32 %v499, %v526
    %v529 = vsub.f32 %v527, %v528
    %v531 = vlaneseq
    %v532 = vshrl.u32 %v531, 7
    %v533 = vsub.s32 0, %v532
    %v534 = vrot.slane %v526, %v533
    %v536 = vmul.f32 %v418, %v534
    %v538 = vlaneseq
    %v539 = vshrl.u32 %v538, 7
    %v540 = vsub.s32 0, %v539
    %v541 = vrot.slane %v529, %v540
    %v543 = vmul.f32 %v425, %v541
    %v544 = vadd.f32 %v536, %v543
    %vm545 = vcmask 64512
    %v547 = vsel %vm545, %v544, 0
    %549 = vmatprep.subr.mxu0 0.0
    %550 = vmatpush1.msra.mxu0 0.0
    %551 = vmatprep.subr.mxu0 0.0
    %552 = vmatpush1.msra.mxu0 0.0
    %553 = vmatprep.subr.mxu0 0.0
    %554 = vmatpush1.msra.mxu0 0.0
    %555 = vmatprep.subr.mxu0 0.0
    %556 = vmatpush1.msra.mxu0 0.0
    %557 = vmatprep.subr.mxu0 0.0
    %558 = vmatpush1.msra.mxu0 0.0
    %559 = vmatprep.subr.mxu0 0.0
    %560 = vmatpush1.msra.mxu0 0.0
    %561 = vmatprep.subr.mxu0 0.0
    %562 = vmatpush1.msra.mxu0 0.0
    %563 = vmatprep.subr.mxu0 0.0
    %564 = vmatpush1.msra.mxu0 0.0
    %565 = vmatprep.subr.mxu0 0.0
    %566 = vmatpush1.msra.mxu0 0.0
    %567 = vmatprep.subr.mxu0 0.0
    %568 = vmatpush1.msra.mxu0 0.0
    %569 = vmatprep.subr.mxu0 0.0
    %570 = vmatpush1.msra.mxu0 0.0
    %571 = vmatprep.subr.mxu0 0.0
    %572 = vmatpush1.msra.mxu0 0.0
    %573 = vmatprep.subr.mxu0 0.0
    %574 = vmatpush1.msra.mxu0 0.0
    %575 = vmatprep.subr.mxu0 0.0
    %576 = vmatpush1.msra.mxu0 0.0
    %577 = vmatprep.subr.mxu0 0.0
    %578 = vmatpush1.msra.mxu0 0.0
    %579 = vmatprep.subr.mxu0 0.0
    %580 = vmatpush1.msra.mxu0 %v106
    %581 = vmatprep.subr.mxu0 0.0
    %582 = vmatpush2.msra.mxu0 0.0
    %583 = vmatprep.subr.mxu0 0.0
    %584 = vmatpush2.msra.mxu0 0.0
    %585 = vmatprep.subr.mxu0 0.0
    %586 = vmatpush2.msra.mxu0 0.0
    %587 = vmatprep.subr.mxu0 0.0
    %588 = vmatpush2.msra.mxu0 0.0
    %589 = vmatprep.subr.mxu0 0.0
    %590 = vmatpush2.msra.mxu0 0.0
    %591 = vmatprep.subr.mxu0 0.0
    %592 = vmatpush2.msra.mxu0 0.0
    %593 = vmatprep.subr.mxu0 0.0
    %594 = vmatpush2.msra.mxu0 0.0
    %595 = vmatprep.subr.mxu0 0.0
    %596 = vmatpush2.msra.mxu0 0.0
    %597 = vmatprep.subr.mxu0 0.0
    %598 = vmatpush2.msra.mxu0 0.0
    %599 = vmatprep.subr.mxu0 0.0
    %600 = vmatpush2.msra.mxu0 0.0
    %601 = vmatprep.subr.mxu0 0.0
    %602 = vmatpush2.msra.mxu0 0.0
    %603 = vmatprep.subr.mxu0 0.0
    %604 = vmatpush2.msra.mxu0 0.0
    %605 = vmatprep.subr.mxu0 0.0
    %606 = vmatpush2.msra.mxu0 0.0
    %607 = vmatprep.subr.mxu0 0.0
    %608 = vmatpush2.msra.mxu0 0.0
    %609 = vmatprep.subr.mxu0 0.0
    %610 = vmatpush2.msra.mxu0 0.0
    %611 = vmatprep.subr.mxu0 0.0
    %612 = vmatpush2.msra.mxu0 0.0
    %613 = vmatprep.mubr.f32.mxu0 0.0
    %614 = vmatmul.mubr.f32.gmra.mxu0 %v547
    %v615 = vpop.f32.mrf.mxu0
    %v616 = vadd.f32 0.0, %v615
    %v617 = vpop.f32.mrf.mxu0
    %618 = vdwg.mxu0
    %v619 = vlaneseq
    %v620 = vshrl.u32 %v619, 7
    %v621 = vsub.s32 0, %v620
    %v622 = vrot.slane %v616, %v621
    %v623 = vmul.f32 %v375, %v622
    %v624 = vmul.f32 %v380, %v622
    %v625 = vmul.f32 %v385, %v622
    %v626 = vmul.f32 %v390, %v622
    %v627 = vlaneseq
    %v628 = vshrl.u32 %v627, 7
    %v629 = vsub.s32 1, %v628
    %v630 = vrot.slane %v616, %v629
    %v631 = vadd.f32 %v623, %v630
    %v632 = vadd.f32 %v624, %v630
    %v633 = vadd.f32 %v625, %v630
    %v634 = vadd.f32 %v626, %v630
    %v635 = vxor.u32 %v631, 2147483648
    %v636 = vxor.u32 %v632, 2147483648
    %v637 = vxor.u32 %v633, 2147483648
    %v638 = vxor.u32 %v634, 2147483648
    %v639 = vmul.f32 %v635, 1.442695
    %v640 = vpow.pop %v639
    %v641 = vmul.f32 %v636, 1.442695
    %v642 = vpow.pop %v641
    %v643 = vmul.f32 %v637, 1.442695
    %v644 = vpow.pop %v643
    %v645 = vmul.f32 %v638, 1.442695
    %v646 = vpow.pop %v645
    %v647 = vadd.f32 %v640, 1.0
    %v648 = vadd.f32 %v642, 1.0
    %v649 = vadd.f32 %v644, 1.0
    %v650 = vadd.f32 %v646, 1.0
    %v651 = vrcp.pop %v647
    %v652 = vmul.f32 1.0, %v651
    %v653 = vrcp.pop %v648
    %v654 = vmul.f32 1.0, %v653
    %v655 = vrcp.pop %v649
    %v656 = vmul.f32 1.0, %v655
    %v657 = vrcp.pop %v650
    %v658 = vmul.f32 1.0, %v657
    %v659 = vmul.f32 %v631, %v652
    %v660 = vmul.f32 %v632, %v654
    %v661 = vmul.f32 %v633, %v656
    %v662 = vmul.f32 %v634, %v658
    %v663 = vmul.f32 %v659, %v77
    %v664 = vmul.f32 %v660, %v78
    %v665 = vmul.f32 %v661, %v79
    %v666 = vmul.f32 %v662, %v80
    %v667 = vrot.slane %v663, 7
    %v668 = vrot.slane %v664, 7
    %v669 = vrot.slane %v665, 7
    %v670 = vrot.slane %v666, 7
    %v671 = vsel %vm113, %v669, %v670
    %v672 = vsel %vm113, %v668, %v669
    %v673 = vsel %vm113, %v667, %v668
    %v674 = vsel %vm113, %v670, %v667
    %v675 = vmul.f32 %v674, %v121
    %v676 = vmul.f32 %v673, %v126
    %v677 = vmul.f32 %v672, %v131
    %v678 = vmul.f32 %v671, %v136
    %v679 = vrot.slane %v663, 1
    %v680 = vrot.slane %v664, 1
    %v681 = vrot.slane %v665, 1
    %v682 = vrot.slane %v666, 1
    %v683 = vsel %vm146, %v681, %v682
    %v684 = vsel %vm146, %v680, %v681
    %v685 = vsel %vm146, %v679, %v680
    %v686 = vsel %vm146, %v682, %v679
    %v687 = vmul.f32 %v685, %v154
    %v688 = vmul.f32 %v684, %v159
    %v689 = vmul.f32 %v683, %v164
    %v690 = vmul.f32 %v686, %v169
    %v691 = vld [vmem:[#allocation5] sm:$0xff]
    %v692 = vld [vmem:[#allocation5 + $0x8] sm:$0xff]
    %v693 = vld [vmem:[#allocation5 + $0x10] sm:$0xff]
    %v694 = vld [vmem:[#allocation5 + $0x18] sm:$0xff]
    %v695 = vld [vmem:[#allocation5 + $0x20] sm:$0xff]
    %v696 = vld [vmem:[#allocation5 + $0x28] sm:$0xff]
    %v697 = vld [vmem:[#allocation5 + $0x30] sm:$0xff]
    %v698 = vld [vmem:[#allocation5 + $0x38] sm:$0xff]
    %v699 = vld [vmem:[#allocation5 + $0x40] sm:$0xff]
    %v700 = vld [vmem:[#allocation5 + $0x48] sm:$0xff]
    %v701 = vld [vmem:[#allocation5 + $0x50] sm:$0xff]
    %v702 = vld [vmem:[#allocation5 + $0x58] sm:$0xff]
    %v703 = vld [vmem:[#allocation5 + $0x60] sm:$0xff]
    %v704 = vld [vmem:[#allocation5 + $0x68] sm:$0xff]
    %v705 = vld [vmem:[#allocation5 + $0x70] sm:$0xff]
    %v706 = vld [vmem:[#allocation5 + $0x78] sm:$0xff]
    %v707 = vld [vmem:[#allocation5 + $0x80] sm:$0xff]
    %v708 = vld [vmem:[#allocation5 + $0x88] sm:$0xff]
    %v709 = vld [vmem:[#allocation5 + $0x90] sm:$0xff]
    %v710 = vld [vmem:[#allocation5 + $0x98] sm:$0xff]
    %v711 = vld [vmem:[#allocation5 + $0xa0] sm:$0xff]
    %v712 = vld [vmem:[#allocation5 + $0xa8] sm:$0xff]
    %v713 = vld [vmem:[#allocation5 + $0xb0] sm:$0xff]
    %v714 = vld [vmem:[#allocation5 + $0xb8] sm:$0xff]
    %v715 = vld [vmem:[#allocation5 + $0xc0] sm:$0xff]
    %v716 = vld [vmem:[#allocation5 + $0xc8] sm:$0xff]
    %v717 = vld [vmem:[#allocation5 + $0xd0] sm:$0xff]
    %v718 = vld [vmem:[#allocation5 + $0xd8] sm:$0xff]
    %v719 = vld [vmem:[#allocation5 + $0xe0] sm:$0xff]
    %v720 = vld [vmem:[#allocation5 + $0xe8] sm:$0xff]
    %v721 = vld [vmem:[#allocation5 + $0xf0] sm:$0xff]
    %v722 = vld [vmem:[#allocation5 + $0xf8] sm:$0xff]
    %v723 = vld [vmem:[#allocation5 + $0x100] sm:$0xff]
    %v724 = vld [vmem:[#allocation5 + $0x108] sm:$0xff]
    %v725 = vld [vmem:[#allocation5 + $0x110] sm:$0xff]
    %v726 = vld [vmem:[#allocation5 + $0x118] sm:$0xff]
    %v727 = vld [vmem:[#allocation5 + $0x120] sm:$0xff]
    %v728 = vld [vmem:[#allocation5 + $0x128] sm:$0xff]
    %v729 = vld [vmem:[#allocation5 + $0x130] sm:$0xff]
    %v730 = vld [vmem:[#allocation5 + $0x138] sm:$0xff]
    %v731 = vld [vmem:[#allocation5 + $0x140] sm:$0xff]
    %v732 = vld [vmem:[#allocation5 + $0x148] sm:$0xff]
    %v733 = vld [vmem:[#allocation5 + $0x150] sm:$0xff]
    %v734 = vld [vmem:[#allocation5 + $0x158] sm:$0xff]
    %v735 = vld [vmem:[#allocation5 + $0x160] sm:$0xff]
    %v736 = vld [vmem:[#allocation5 + $0x168] sm:$0xff]
    %v737 = vld [vmem:[#allocation5 + $0x170] sm:$0xff]
    %v738 = vld [vmem:[#allocation5 + $0x178] sm:$0xff]
    %739 = vmatprep.subr.mxu0 0.0
    %740 = vmatpush1.msra.mxu0 %v706
    %741 = vmatprep.subr.mxu0 0.0
    %742 = vmatpush1.msra.mxu0 %v705
    %743 = vmatprep.subr.mxu0 0.0
    %744 = vmatpush1.msra.mxu0 %v704
    %745 = vmatprep.subr.mxu0 0.0
    %746 = vmatpush1.msra.mxu0 %v703
    %747 = vmatprep.subr.mxu0 0.0
    %748 = vmatpush1.msra.mxu0 %v702
    %749 = vmatprep.subr.mxu0 0.0
    %750 = vmatpush1.msra.mxu0 %v701
    %751 = vmatprep.subr.mxu0 0.0
    %752 = vmatpush1.msra.mxu0 %v700
    %753 = vmatprep.subr.mxu0 0.0
    %754 = vmatpush1.msra.mxu0 %v699
    %755 = vmatprep.subr.mxu0 0.0
    %756 = vmatpush1.msra.mxu0 %v698
    %757 = vmatprep.subr.mxu0 0.0
    %758 = vmatpush1.msra.mxu0 %v697
    %759 = vmatprep.subr.mxu0 0.0
    %760 = vmatpush1.msra.mxu0 %v696
    %761 = vmatprep.subr.mxu0 0.0
    %762 = vmatpush1.msra.mxu0 %v695
    %763 = vmatprep.subr.mxu0 0.0
    %764 = vmatpush1.msra.mxu0 %v694
    %765 = vmatprep.subr.mxu0 0.0
    %766 = vmatpush1.msra.mxu0 %v693
    %767 = vmatprep.subr.mxu0 0.0
    %768 = vmatpush1.msra.mxu0 %v692
    %769 = vmatprep.subr.mxu0 0.0
    %770 = vmatpush1.msra.mxu0 %v691
    %771 = vmatprep.subr.mxu0 0.0
    %772 = vmatpush2.msra.mxu0 %v722
    %773 = vmatprep.subr.mxu0 0.0
    %774 = vmatpush2.msra.mxu0 %v721
    %775 = vmatprep.subr.mxu0 0.0
    %776 = vmatpush2.msra.mxu0 %v720
    %777 = vmatprep.subr.mxu0 0.0
    %778 = vmatpush2.msra.mxu0 %v719
    %779 = vmatprep.subr.mxu0 0.0
    %780 = vmatpush2.msra.mxu0 %v718
    %781 = vmatprep.subr.mxu0 0.0
    %782 = vmatpush2.msra.mxu0 %v717
    %783 = vmatprep.subr.mxu0 0.0
    %784 = vmatpush2.msra.mxu0 %v716
    %785 = vmatprep.subr.mxu0 0.0
    %786 = vmatpush2.msra.mxu0 %v715
    %787 = vmatprep.subr.mxu0 0.0
    %788 = vmatpush2.msra.mxu0 %v714
    %789 = vmatprep.subr.mxu0 0.0
    %790 = vmatpush2.msra.mxu0 %v713
    %791 = vmatprep.subr.mxu0 0.0
    %792 = vmatpush2.msra.mxu0 %v712
    %793 = vmatprep.subr.mxu0 0.0
    %794 = vmatpush2.msra.mxu0 %v711
    %795 = vmatprep.subr.mxu0 0.0
    %796 = vmatpush2.msra.mxu0 %v710
    %797 = vmatprep.subr.mxu0 0.0
    %798 = vmatpush2.msra.mxu0 %v709
    %799 = vmatprep.subr.mxu0 0.0
    %800 = vmatpush2.msra.mxu0 %v708
    %801 = vmatprep.subr.mxu0 0.0
    %802 = vmatpush2.msra.mxu0 %v707
    %803 = vmatprep.mubr.f32.mxu0 %v663
    %804 = vmatmul.mubr.f32.gmra.mxu0 %v675
    %v805 = vpop.f32.mrf.mxu0
    %v806 = vadd.f32 0.0, %v805
    %v807 = vpop.f32.mrf.mxu0
    %808 = vmatprep.mubr.f32.mxu0 %v664
    %809 = vmatmul.mubr.f32.gmra.mxu0 %v676
    %v810 = vpop.f32.mrf.mxu0
    %v811 = vadd.f32 0.0, %v810
    %v812 = vpop.f32.mrf.mxu0
    %813 = vmatprep.mubr.f32.mxu0 %v665
    %814 = vmatmul.mubr.f32.gmra.mxu0 %v677
    %v815 = vpop.f32.mrf.mxu0
    %v816 = vadd.f32 0.0, %v815
    %v817 = vpop.f32.mrf.mxu0
    %818 = vmatprep.mubr.f32.mxu0 %v666
    %819 = vmatmul.mubr.f32.gmra.mxu0 %v678
    %v820 = vpop.f32.mrf.mxu0
    %v821 = vadd.f32 0.0, %v820
    %v822 = vpop.f32.mrf.mxu0
    %823 = vdwg.mxu0
    %824 = vmatprep.subr.mxu0 0.0
    %825 = vmatpush1.msra.mxu0 %v738
    %826 = vmatprep.subr.mxu0 0.0
    %827 = vmatpush1.msra.mxu0 %v737
    %828 = vmatprep.subr.mxu0 0.0
    %829 = vmatpush1.msra.mxu0 %v736
    %830 = vmatprep.subr.mxu0 0.0
    %831 = vmatpush1.msra.mxu0 %v735
    %832 = vmatprep.subr.mxu0 0.0
    %833 = vmatpush1.msra.mxu0 %v734
    %834 = vmatprep.subr.mxu0 0.0
    %835 = vmatpush1.msra.mxu0 %v733
    %836 = vmatprep.subr.mxu0 0.0
    %837 = vmatpush1.msra.mxu0 %v732
    %838 = vmatprep.subr.mxu0 0.0
    %839 = vmatpush1.msra.mxu0 %v731
    %840 = vmatprep.subr.mxu0 0.0
    %841 = vmatpush1.msra.mxu0 %v730
    %842 = vmatprep.subr.mxu0 0.0
    %843 = vmatpush1.msra.mxu0 %v729
    %844 = vmatprep.subr.mxu0 0.0
    %845 = vmatpush1.msra.mxu0 %v728
    %846 = vmatprep.subr.mxu0 0.0
    %847 = vmatpush1.msra.mxu0 %v727
    %848 = vmatprep.subr.mxu0 0.0
    %849 = vmatpush1.msra.mxu0 %v726
    %850 = vmatprep.subr.mxu0 0.0
    %851 = vmatpush1.msra.mxu0 %v725
    %852 = vmatprep.subr.mxu0 0.0
    %853 = vmatpush1.msra.mxu0 %v724
    %854 = vmatprep.subr.mxu0 0.0
    %855 = vmatpush1.msra.mxu0 %v723
    %856 = vmatprep.subr.mxu0 0.0
    %857 = vmatpush2.msra.mxu0 0.0
    %858 = vmatprep.subr.mxu0 0.0
    %859 = vmatpush2.msra.mxu0 0.0
    %860 = vmatprep.subr.mxu0 0.0
    %861 = vmatpush2.msra.mxu0 0.0
    %862 = vmatprep.subr.mxu0 0.0
    %863 = vmatpush2.msra.mxu0 0.0
    %864 = vmatprep.subr.mxu0 0.0
    %865 = vmatpush2.msra.mxu0 0.0
    %866 = vmatprep.subr.mxu0 0.0
    %867 = vmatpush2.msra.mxu0 0.0
    %868 = vmatprep.subr.mxu0 0.0
    %869 = vmatpush2.msra.mxu0 0.0
    %870 = vmatprep.subr.mxu0 0.0
    %871 = vmatpush2.msra.mxu0 0.0
    %872 = vmatprep.subr.mxu0 0.0
    %873 = vmatpush2.msra.mxu0 0.0
    %874 = vmatprep.subr.mxu0 0.0
    %875 = vmatpush2.msra.mxu0 0.0
    %876 = vmatprep.subr.mxu0 0.0
    %877 = vmatpush2.msra.mxu0 0.0
    %878 = vmatprep.subr.mxu0 0.0
    %879 = vmatpush2.msra.mxu0 0.0
    %880 = vmatprep.subr.mxu0 0.0
    %881 = vmatpush2.msra.mxu0 0.0
    %882 = vmatprep.subr.mxu0 0.0
    %883 = vmatpush2.msra.mxu0 0.0
    %884 = vmatprep.subr.mxu0 0.0
    %885 = vmatpush2.msra.mxu0 0.0
    %886 = vmatprep.subr.mxu0 0.0
    %887 = vmatpush2.msra.mxu0 0.0
    %888 = vmatprep.mubr.f32.mxu0 0.0
    %889 = vmatmul.mubr.f32.gmra.mxu0 %v687
    %v890 = vpop.f32.mrf.mxu0
    %v891 = vadd.f32 %v806, %v890
    %v892 = vpop.f32.mrf.mxu0
    %893 = vmatprep.mubr.f32.mxu0 0.0
    %894 = vmatmul.mubr.f32.gmra.mxu0 %v688
    %v895 = vpop.f32.mrf.mxu0
    %v896 = vadd.f32 %v811, %v895
    %v897 = vpop.f32.mrf.mxu0
    %898 = vmatprep.mubr.f32.mxu0 0.0
    %899 = vmatmul.mubr.f32.gmra.mxu0 %v689
    %v900 = vpop.f32.mrf.mxu0
    %v901 = vadd.f32 %v816, %v900
    %v902 = vpop.f32.mrf.mxu0
    %903 = vmatprep.mubr.f32.mxu0 0.0
    %904 = vmatmul.mubr.f32.gmra.mxu0 %v690
    %v905 = vpop.f32.mrf.mxu0
    %v906 = vadd.f32 %v821, %v905
    %v907 = vpop.f32.mrf.mxu0
    %908 = vdwg.mxu0
    %v909 = vadd.f32 %v891, %v896
    %v910 = vadd.f32 %v909, %v901
    %v911 = vadd.f32 %v910, %v906
    %v912 = vrot.slane %v911, 4
    %v913 = vadd.f32 %v911, %v912
    %v914 = vrot.slane %v913, 2
    %v915 = vadd.f32 %v913, %v914
    %v916 = vrot.slane %v915, 1
    %v917 = vadd.f32 %v915, %v916
    %v918 = vmul.f32 %v891, %v891
    %v919 = vmul.f32 %v896, %v896
    %v920 = vmul.f32 %v901, %v901
    %v921 = vmul.f32 %v906, %v906
    %v922 = vadd.f32 %v918, %v919
    %v923 = vadd.f32 %v922, %v920
    %v924 = vadd.f32 %v923, %v921
    %v925 = vrot.slane %v924, 4
    %v926 = vadd.f32 %v924, %v925
    %v927 = vrot.slane %v926, 2
    %v928 = vadd.f32 %v926, %v927
    %v929 = vrot.slane %v928, 1
    %v930 = vadd.f32 %v928, %v929
    %v931 = vmul.f32 %v418, %v917
    %v932 = vmul.f32 %v425, %v930
    %v933 = vadd.f32 %v931, %v932
    %934 = vmatprep.subr.mxu0 0.0
    %935 = vmatpush1.msra.mxu0 %v105
    %936 = vmatprep.subr.mxu0 0.0
    %937 = vmatpush1.msra.mxu0 %v104
    %938 = vmatprep.subr.mxu0 0.0
    %939 = vmatpush1.msra.mxu0 %v103
    %940 = vmatprep.subr.mxu0 0.0
    %941 = vmatpush1.msra.mxu0 %v102
    %942 = vmatprep.subr.mxu0 0.0
    %943 = vmatpush1.msra.mxu0 %v101
    %944 = vmatprep.subr.mxu0 0.0
    %945 = vmatpush1.msra.mxu0 %v100
    %946 = vmatprep.subr.mxu0 0.0
    %947 = vmatpush1.msra.mxu0 %v99
    %948 = vmatprep.subr.mxu0 0.0
    %949 = vmatpush1.msra.mxu0 %v98
    %950 = vmatprep.subr.mxu0 0.0
    %951 = vmatpush1.msra.mxu0 %v97
    %952 = vmatprep.subr.mxu0 0.0
    %953 = vmatpush1.msra.mxu0 %v96
    %954 = vmatprep.subr.mxu0 0.0
    %955 = vmatpush1.msra.mxu0 %v95
    %956 = vmatprep.subr.mxu0 0.0
    %957 = vmatpush1.msra.mxu0 %v94
    %958 = vmatprep.subr.mxu0 0.0
    %959 = vmatpush1.msra.mxu0 %v93
    %960 = vmatprep.subr.mxu0 0.0
    %961 = vmatpush1.msra.mxu0 %v92
    %962 = vmatprep.subr.mxu0 0.0
    %963 = vmatpush1.msra.mxu0 %v91
    %964 = vmatprep.subr.mxu0 0.0
    %965 = vmatpush1.msra.mxu0 %v90
    %966 = vmatprep.subr.mxu0 0.0
    %967 = vmatpush2.msra.mxu0 0.0
    %968 = vmatprep.subr.mxu0 0.0
    %969 = vmatpush2.msra.mxu0 0.0
    %970 = vmatprep.subr.mxu0 0.0
    %971 = vmatpush2.msra.mxu0 0.0
    %972 = vmatprep.subr.mxu0 0.0
    %973 = vmatpush2.msra.mxu0 0.0
    %974 = vmatprep.subr.mxu0 0.0
    %975 = vmatpush2.msra.mxu0 0.0
    %976 = vmatprep.subr.mxu0 0.0
    %977 = vmatpush2.msra.mxu0 0.0
    %978 = vmatprep.subr.mxu0 0.0
    %979 = vmatpush2.msra.mxu0 0.0
    %980 = vmatprep.subr.mxu0 0.0
    %981 = vmatpush2.msra.mxu0 0.0
    %982 = vmatprep.subr.mxu0 0.0
    %983 = vmatpush2.msra.mxu0 0.0
    %984 = vmatprep.subr.mxu0 0.0
    %985 = vmatpush2.msra.mxu0 0.0
    %986 = vmatprep.subr.mxu0 0.0
    %987 = vmatpush2.msra.mxu0 0.0
    %988 = vmatprep.subr.mxu0 0.0
    %989 = vmatpush2.msra.mxu0 0.0
    %990 = vmatprep.subr.mxu0 0.0
    %991 = vmatpush2.msra.mxu0 0.0
    %992 = vmatprep.subr.mxu0 0.0
    %993 = vmatpush2.msra.mxu0 0.0
    %994 = vmatprep.subr.mxu0 0.0
    %995 = vmatpush2.msra.mxu0 0.0
    %996 = vmatprep.subr.mxu0 0.0
    %997 = vmatpush2.msra.mxu0 0.0
    %998 = vmatprep.mubr.f32.mxu0 0.0
    %999 = vmatmul.mubr.f32.gmra.mxu0 %v933
    %v1000 = vpop.f32.mrf.mxu0
    %v1001 = vadd.f32 0.0, %v1000
    %v1002 = vpop.f32.mrf.mxu0
    %1003 = vdwg.mxu0
    %v1004 = vmul.f32 %v1001, 0.001953125
    %v1005 = vmul.f32 %v1004, %v1004
    %v1007 = vrot.slane %v1005, 7
    %v1009 = vsub.f32 %v1004, %v1007
    %v1010 = vmax.f32 %v1009, 0.0
    %v1011 = vld [vmem:[%s11] sm:$0x1]
    %v1012 = vadd.f32 %v1010, 1e-05
    %v1013 = vrsqrt.pop %v1012
    %v1016 = vunpack.c.l.s4 1966171168
    %v1017 = vunpack.c.0.s8 %v1016
    %v1018 = vlaneseq
    %v1019 = vshrl.u32 %v1018, 7
    %v1020 = vsub.s32 %v1017, %v1019
    %v1021 = vrot.slane %v1013, %v1020
    %v1022 = vcombine.high %v1021, %v1021
    %v1024 = vunpack.c.l.s4 1966171168
    %v1025 = vunpack.c.0.s8 %v1024
    %v1026 = vlaneseq
    %v1027 = vshrl.u32 %v1026, 7
    %v1028 = vsub.s32 %v1025, %v1027
    %v1029 = vrot.slane %v1022, %v1028
    %v1031 = vmul.f32 %v1011, %v1029
    %v1032 = vld [vmem:[%s12] sm:$0x1]
    %v1033 = vmul.f32 %v1004, %v1031
    %v1034 = vsub.f32 %v1032, %v1033
    %v1036 = vlaneseq
    %v1037 = vshrl.u32 %v1036, 7
    %v1038 = vsub.s32 0, %v1037
    %v1039 = vrot.slane %v1031, %v1038
    %v1041 = vmul.f32 %v418, %v1039
    %v1043 = vlaneseq
    %v1044 = vshrl.u32 %v1043, 7
    %v1045 = vsub.s32 0, %v1044
    %v1046 = vrot.slane %v1034, %v1045
    %v1048 = vmul.f32 %v425, %v1046
    %v1049 = vadd.f32 %v1041, %v1048
    %v1051 = vsel %vm545, %v1049, 0
    %1053 = vmatprep.subr.mxu0 0.0
    %1054 = vmatpush1.msra.mxu0 0.0
    %1055 = vmatprep.subr.mxu0 0.0
    %1056 = vmatpush1.msra.mxu0 0.0
    %1057 = vmatprep.subr.mxu0 0.0
    %1058 = vmatpush1.msra.mxu0 0.0
    %1059 = vmatprep.subr.mxu0 0.0
    %1060 = vmatpush1.msra.mxu0 0.0
    %1061 = vmatprep.subr.mxu0 0.0
    %1062 = vmatpush1.msra.mxu0 0.0
    %1063 = vmatprep.subr.mxu0 0.0
    %1064 = vmatpush1.msra.mxu0 0.0
    %1065 = vmatprep.subr.mxu0 0.0
    %1066 = vmatpush1.msra.mxu0 0.0
    %1067 = vmatprep.subr.mxu0 0.0
    %1068 = vmatpush1.msra.mxu0 0.0
    %1069 = vmatprep.subr.mxu0 0.0
    %1070 = vmatpush1.msra.mxu0 0.0
    %1071 = vmatprep.subr.mxu0 0.0
    %1072 = vmatpush1.msra.mxu0 0.0
    %1073 = vmatprep.subr.mxu0 0.0
    %1074 = vmatpush1.msra.mxu0 0.0
    %1075 = vmatprep.subr.mxu0 0.0
    %1076 = vmatpush1.msra.mxu0 0.0
    %1077 = vmatprep.subr.mxu0 0.0
    %1078 = vmatpush1.msra.mxu0 0.0
    %1079 = vmatprep.subr.mxu0 0.0
    %1080 = vmatpush1.msra.mxu0 0.0
    %1081 = vmatprep.subr.mxu0 0.0
    %1082 = vmatpush1.msra.mxu0 0.0
    %1083 = vmatprep.subr.mxu0 0.0
    %1084 = vmatpush1.msra.mxu0 %v106
    %1085 = vmatprep.subr.mxu0 0.0
    %1086 = vmatpush2.msra.mxu0 0.0
    %1087 = vmatprep.subr.mxu0 0.0
    %1088 = vmatpush2.msra.mxu0 0.0
    %1089 = vmatprep.subr.mxu0 0.0
    %1090 = vmatpush2.msra.mxu0 0.0
    %1091 = vmatprep.subr.mxu0 0.0
    %1092 = vmatpush2.msra.mxu0 0.0
    %1093 = vmatprep.subr.mxu0 0.0
    %1094 = vmatpush2.msra.mxu0 0.0
    %1095 = vmatprep.subr.mxu0 0.0
    %1096 = vmatpush2.msra.mxu0 0.0
    %1097 = vmatprep.subr.mxu0 0.0
    %1098 = vmatpush2.msra.mxu0 0.0
    %1099 = vmatprep.subr.mxu0 0.0
    %1100 = vmatpush2.msra.mxu0 0.0
    %1101 = vmatprep.subr.mxu0 0.0
    %1102 = vmatpush2.msra.mxu0 0.0
    %1103 = vmatprep.subr.mxu0 0.0
    %1104 = vmatpush2.msra.mxu0 0.0
    %1105 = vmatprep.subr.mxu0 0.0
    %1106 = vmatpush2.msra.mxu0 0.0
    %1107 = vmatprep.subr.mxu0 0.0
    %1108 = vmatpush2.msra.mxu0 0.0
    %1109 = vmatprep.subr.mxu0 0.0
    %1110 = vmatpush2.msra.mxu0 0.0
    %1111 = vmatprep.subr.mxu0 0.0
    %1112 = vmatpush2.msra.mxu0 0.0
    %1113 = vmatprep.subr.mxu0 0.0
    %1114 = vmatpush2.msra.mxu0 0.0
    %1115 = vmatprep.subr.mxu0 0.0
    %1116 = vmatpush2.msra.mxu0 0.0
    %1117 = vmatprep.mubr.f32.mxu0 0.0
    %1118 = vmatmul.mubr.f32.gmra.mxu0 %v1051
    %v1119 = vpop.f32.mrf.mxu0
    %v1120 = vadd.f32 0.0, %v1119
    %v1121 = vpop.f32.mrf.mxu0
    %1122 = vdwg.mxu0
    %v1123 = vlaneseq
    %v1124 = vshrl.u32 %v1123, 7
    %v1125 = vsub.s32 0, %v1124
    %v1126 = vrot.slane %v1120, %v1125
    %v1127 = vmul.f32 %v891, %v1126
    %v1128 = vmul.f32 %v896, %v1126
    %v1129 = vmul.f32 %v901, %v1126
    %v1130 = vmul.f32 %v906, %v1126
    %v1131 = vlaneseq
    %v1132 = vshrl.u32 %v1131, 7
    %v1133 = vsub.s32 1, %v1132
    %v1134 = vrot.slane %v1120, %v1133
    %v1135 = vadd.f32 %v1127, %v1134
    %v1136 = vadd.f32 %v1128, %v1134
    %v1137 = vadd.f32 %v1129, %v1134
    %v1138 = vadd.f32 %v1130, %v1134
    %v1139 = vadd.f32 %v1135, %v73
    %v1140 = vadd.f32 %v1136, %v74
    %v1141 = vadd.f32 %v1137, %v75
    %v1142 = vadd.f32 %v1138, %v76
    %v1143 = vxor.u32 %v1139, 2147483648
    %v1144 = vxor.u32 %v1140, 2147483648
    %v1145 = vxor.u32 %v1141, 2147483648
    %v1146 = vxor.u32 %v1142, 2147483648
    %v1147 = vmul.f32 %v1143, 1.442695
    %v1148 = vpow.pop %v1147
    %v1149 = vmul.f32 %v1144, 1.442695
    %v1150 = vpow.pop %v1149
    %v1151 = vmul.f32 %v1145, 1.442695
    %v1152 = vpow.pop %v1151
    %v1153 = vmul.f32 %v1146, 1.442695
    %v1154 = vpow.pop %v1153
    %v1155 = vadd.f32 %v1148, 1.0
    %v1156 = vadd.f32 %v1150, 1.0
    %v1157 = vadd.f32 %v1152, 1.0
    %v1158 = vadd.f32 %v1154, 1.0
    %v1159 = vrcp.pop %v1155
    %v1160 = vmul.f32 1.0, %v1159
    %v1161 = vrcp.pop %v1156
    %v1162 = vmul.f32 1.0, %v1161
    %v1163 = vrcp.pop %v1157
    %v1164 = vmul.f32 1.0, %v1163
    %v1165 = vrcp.pop %v1158
    %v1166 = vmul.f32 1.0, %v1165
    %v1167 = vmul.f32 %v1139, %v1160
    %v1168 = vmul.f32 %v1140, %v1162
    %v1169 = vmul.f32 %v1141, %v1164
    %v1170 = vmul.f32 %v1142, %v1166
    %v1171 = vmul.f32 %v1167, %v77
    %v1172 = vmul.f32 %v1168, %v78
    %v1173 = vmul.f32 %v1169, %v79
    %v1174 = vmul.f32 %v1170, %v80
    %1175 = vst [vmem:[#allocation7] sm:$0xff] %v1171
    %1176 = vst [vmem:[#allocation7 + $0x8] sm:$0xff] %v1172
    %1177 = vst [vmem:[#allocation7 + $0x10] sm:$0xff] %v1173
    %1178 = vst [vmem:[#allocation7 + $0x18] sm:$0xff] %v1174
    // Predicated region
    $region62: #{tpu_custom_call.1} parent=1 // pred_check
      _
    $region63: #{tpu_custom_call.1} parent=1 // pred_check_branch
      %1180 = sbr.rel (0) target = $region65
    $region64: #{tpu_custom_call.1} parent=1 // pred_region
      %s1182 = ssub.s32 512, 512
      %1183 = vsyncadd [#allocation4], %s1182
      %s1184 = sshll.u32 [#allocation7], 4
      %s1185 = int_to_ptr.vmem [resolvable:$true] %s1184
      %1190 = dma.vmem_to_hbm [thread:$0]  %s1185, 512, %s13, [#allocation4], 128, 128, 8
    $region65: #{tpu_custom_call.1} parent=1 // pred_fallthru
      _
    // Predicated region
    $region66: #{tpu_custom_call.1} parent=1 // pred_check
      _
    $region67: #{tpu_custom_call.1} parent=1 // pred_check_branch
      %1192 = sbr.rel (0) target = $region69
    $region68: #{tpu_custom_call.1} parent=1 // pred_region
      %1193 = dma.done [#allocation4], 512
    $region69: #{tpu_custom_call.1} parent=1 // pred_fallthru
      _
    %1194 = vsyncpa [#allocation3], 1
    %1195 = vsyncpa [#allocation6], 1
    %1196 = vsyncpa [#allocation4], 1

</llo_original>
